<compile_context>
chip_gen: v5e
topology: v5e:2x2
jax: 0.10.0
libtpu: 0.0.40
codegen_flags: <defaults>
</compile_context>

<pallas_src>
import functools
import math

import jax
import jax.numpy as jnp
from jax import lax
from jax.experimental import pallas as pl
from jax.experimental.pallas import tpu as pltpu


# --------------------- per-generation VMEM / tiling config -------------------

def _vmem_capacity_bytes():
    try:
        return int(pltpu.get_tpu_info().vmem_capacity_bytes)
    except Exception:
        return 64 * 1024 * 1024            # conservative (v7x per-TC figure)


_VMEM_CAP = _vmem_capacity_bytes()
_VMEM_LIMIT = int(0.75 * _VMEM_CAP)        # ~96 MiB on v5e/v6e (128 MiB), ~48 MiB on v7x (64 MiB)
_ROW_TILE_CAP = 512 if _VMEM_CAP >= 100 * 1024 * 1024 else 256


def _compiler_params(dims):
    return pltpu.CompilerParams(dimension_semantics=dims,
                                vmem_limit_bytes=_VMEM_LIMIT)


# ---------------- single-buffering probe for grid-invariant blocks -----------

def _probe_copy_kernel(x_ref, o_ref):
    o_ref[...] = x_ref[...]


def _probe_single_buffer():
    """pipeline_mode=pl.Buffered(1) for constant-index blocks; probed with a tiny
    pipelined kernel so we fall back cleanly if unsupported on this JAX/TPU."""
    try:
        kw = dict(pipeline_mode=pl.Buffered(1))
        f = pl.pallas_call(
            _probe_copy_kernel,
            out_shape=jax.ShapeDtypeStruct((16, 128), jnp.float32),
            grid=(2,),
            in_specs=[pl.BlockSpec((8, 128), lambda i: (0, 0), **kw)],
            out_specs=pl.BlockSpec((8, 128), lambda i: (i, 0)),
        )
        jax.block_until_ready(f(jnp.zeros((8, 128), jnp.float32)))
        return kw
    except Exception:
        return {}


_SINGLE_BUF = _probe_single_buffer()


def _const_spec(shape):
    """BlockSpec for a block whose index never changes across the grid
    (weights / biases / LN params): single-buffered when supported."""
    ndim = len(shape)
    return pl.BlockSpec(shape, lambda *_: (0,) * ndim, **_SINGLE_BUF)


# ----------------------------- tiling helpers --------------------------------

def _row_tile(M, cap=None):
    """Row-tile size: as large as possible (up to cap), sublane(8)-aligned."""
    cap = _ROW_TILE_CAP if cap is None else cap
    t = min(cap, M)
    return max(8, ((t + 7) // 8) * 8)


def _ff_tile(F, cap=512):
    """d_ff tile: full F when small, else the largest 128-multiple divisor."""
    if F <= cap:
        return F
    for t in (512, 384, 256, 128):
        if F % t == 0:
            return t
    # TODO(synk): mask ragged d_ff tiles instead of falling back to full F.
    return F


# ----------------------------- Pallas kernels --------------------------------

def _qkv_proj_kernel(x_ref, w_ref, b_ref, q_ref, k_ref, v_ref, *, d_model):
    # x: (tile_m, D), w: (D, 3D) [Q|K|V], b: (1, 3D) -> three lane-dense (tile_m, D) outputs.
    x = x_ref[...].astype(w_ref.dtype)
    y = jnp.dot(x, w_ref[...], preferred_element_type=jnp.float32) + b_ref[...]
    q_ref[...] = y[:, :d_model]
    k_ref[...] = y[:, d_model:2 * d_model]
    v_ref[...] = y[:, 2 * d_model:]


def fused_qkv_projection(x2d, wqkv, bqkv, *, tile_m):
    M, D = x2d.shape
    N3 = wqkv.shape[1]
    d_model = N3 // 3
    kern = functools.partial(_qkv_proj_kernel, d_model=d_model)
    return pl.pallas_call(
        kern,
        out_shape=tuple(jax.ShapeDtypeStruct((M, d_model), jnp.float32) for _ in range(3)),
        grid=(pl.cdiv(M, tile_m),),
        in_specs=[
            pl.BlockSpec((tile_m, D), lambda i: (i, 0)),
            _const_spec((D, N3)),
            _const_spec((1, N3)),
        ],
        out_specs=tuple(pl.BlockSpec((tile_m, d_model), lambda i: (i, 0)) for _ in range(3)),
        compiler_params=_compiler_params(("parallel",)),
    )(x2d, wqkv, bqkv)


def _mha_core_kernel(q_ref, k_ref, v_ref, o_ref, *, num_heads, dk, scale,
                     compute_dtype, approx_recip):
    # q: (1, tq, D), k/v: (1, S, D). Per-head results stored directly into o_ref.
    # TODO(synk): attention mask not wired (forward assumes mask=None).
    # TODO(synk): stream K/V tiles with online (flash) softmax for production S.
    q = q_ref[0]
    k = k_ref[0]
    v = v_ref[0]
    for h in range(num_heads):                 # small static head loop
        lo = h * dk
        hi = lo + dk
        # fold 1/sqrt(dk) into q (tq*dk mults instead of tq*S on the scores)
        qh = (q[:, lo:hi] * scale).astype(compute_dtype)
        kh = k[:, lo:hi].astype(compute_dtype)
        # trans-B matmul: contract last dims, no k.T materialized
        s = lax.dot_general(qh, kh, (((1,), (1,)), ((), ())),
                            preferred_element_type=jnp.float32)       # (tq, S)
        m = jnp.max(s, axis=-1, keepdims=True)
        p = jnp.exp(s - m)
        p = p * pl.reciprocal(jnp.sum(p, axis=-1, keepdims=True), approx=approx_recip)
        out_h = jnp.dot(p.astype(compute_dtype), v[:, lo:hi].astype(compute_dtype),
                        preferred_element_type=jnp.float32)           # (tq, dk)
        # direct per-head store: no head_outs list, no lane-concat relayout
        o_ref[0, :, lo:hi] = out_h


def multi_head_attention_core(q3, k3, v3, num_heads, *, compute_dtype, approx_recip):
    B, S, D = q3.shape
    dk = D // num_heads
    tq = _row_tile(S, cap=256)
    kern = functools.partial(_mha_core_kernel, num_heads=num_heads, dk=dk,
                             scale=1.0 / math.sqrt(dk),
                             compute_dtype=compute_dtype, approx_recip=approx_recip)
    return pl.pallas_call(
        kern,
        out_shape=jax.ShapeDtypeStruct((B, S, D), jnp.float32),
        grid=(B, pl.cdiv(S, tq)),
        in_specs=[
            pl.BlockSpec((1, tq, D), lambda b, qi: (b, qi, 0)),
            pl.BlockSpec((1, S, D), lambda b, qi: (b, 0, 0)),
            pl.BlockSpec((1, S, D), lambda b, qi: (b, 0, 0)),
        ],
        out_specs=pl.BlockSpec((1, tq, D), lambda b, qi: (b, qi, 0)),
        compiler_params=_compiler_params(("parallel", "parallel")),
    )(q3, k3, v3)


def _proj_add_ln_kernel(attn_ref, res_ref, wo_ref, bo_ref, g_ref, b_ref, o_ref, *, eps):
    # output projection fused with residual add + LayerNorm (LN reductions on XLU/EUP).
    a = attn_ref[...].astype(wo_ref.dtype)
    y = jnp.dot(a, wo_ref[...], preferred_element_type=jnp.float32) + bo_ref[...]
    z = res_ref[...] + y
    mean = jnp.mean(z, axis=-1, keepdims=True)
    var = jnp.mean((z - mean) ** 2, axis=-1, keepdims=True)   # biased, like nn.LayerNorm
    o_ref[...] = (z - mean) * lax.rsqrt(var + eps) * g_ref[...] + b_ref[...]


def proj_add_layernorm(attn2d, res2d, wo, bo, gamma, beta, *, tile_m, eps=1e-5):
    M, D = attn2d.shape
    kern = functools.partial(_proj_add_ln_kernel, eps=eps)
    return pl.pallas_call(
        kern,
        out_shape=jax.ShapeDtypeStruct((M, D), jnp.float32),
        grid=(pl.cdiv(M, tile_m),),
        in_specs=[
            pl.BlockSpec((tile_m, D), lambda i: (i, 0)),
            pl.BlockSpec((tile_m, D), lambda i: (i, 0)),
            _const_spec((D, D)),
            _const_spec((1, D)),
            _const_spec((1, D)),
            _const_spec((1, D)),
        ],
        out_specs=pl.BlockSpec((tile_m, D), lambda i: (i, 0)),
        compiler_params=_compiler_params(("parallel",)),
    )(attn2d, res2d, wo, bo, gamma, beta)


def _ffn_add_ln_kernel(x_ref, w1_ref, b1_ref, w2_ref, b2_ref, g_ref, b_ref,
                       o_ref, acc_ref, *, eps):
    # fc1 -> ReLU -> fc2 tiled over d_ff (reduction grid axis), residual + LayerNorm epilogue.
    j = pl.program_id(1)

    @pl.when(j == 0)
    def _():
        acc_ref[...] = jnp.zeros_like(acc_ref)

    x = x_ref[...]
    h = jnp.dot(x.astype(w1_ref.dtype), w1_ref[...],
                preferred_element_type=jnp.float32) + b1_ref[...]
    h = jnp.maximum(h, 0.0)
    acc_ref[...] += jnp.dot(h.astype(w2_ref.dtype), w2_ref[...],
                            preferred_element_type=jnp.float32)

    @pl.when(j == pl.num_programs(1) - 1)
    def _():
        z = x + acc_ref[...] + b2_ref[...]
        mean = jnp.mean(z, axis=-1, keepdims=True)
        var = jnp.mean((z - mean) ** 2, axis=-1, keepdims=True)
        o_ref[...] = (z - mean) * lax.rsqrt(var + eps) * g_ref[...] + b_ref[...]


def ffn_add_layernorm(x2d, w1, b1, w2, b2, gamma, beta, *, tile_m, eps=1e-5):
    M, D = x2d.shape
    F = w1.shape[1]
    tile_f = _ff_tile(F)
    kern = functools.partial(_ffn_add_ln_kernel, eps=eps)
    return pl.pallas_call(
        kern,
        out_shape=jax.ShapeDtypeStruct((M, D), jnp.float32),
        grid=(pl.cdiv(M, tile_m), pl.cdiv(F, tile_f)),
        in_specs=[
            pl.BlockSpec((tile_m, D), lambda i, j: (i, 0)),
            pl.BlockSpec((D, tile_f), lambda i, j: (0, j)),
            pl.BlockSpec((1, tile_f), lambda i, j: (0, j)),
            pl.BlockSpec((tile_f, D), lambda i, j: (j, 0)),
            _const_spec((1, D)),
            _const_spec((1, D)),
            _const_spec((1, D)),
        ],
        out_specs=pl.BlockSpec((tile_m, D), lambda i, j: (i, 0)),
        scratch_shapes=[pltpu.VMEM((tile_m, D), jnp.float32)],
        compiler_params=_compiler_params(("parallel", "arbitrary")),
    )(x2d, w1, b1, w2, b2, gamma, beta)


# --------------------------- parameter preparation ---------------------------

def prepare_encoder_params(params, *, compute_dtype=jnp.float32):
    """One-time packing (hoisted out of the forward pass): Q/K/V weights fused into a
    single (D, 3D) matrix, biases/LN params reshaped to (1, N) f32, matmul weights
    optionally cast to bf16 (MXU operands)."""
    wd = compute_dtype
    D = params["wq"].shape[0]
    return {
        "wqkv": jnp.concatenate([params["wq"], params["wk"], params["wv"]], axis=1).astype(wd),
        "bqkv": jnp.concatenate([params["bq"], params["bk"], params["bv"]]
                                ).reshape(1, 3 * D).astype(jnp.float32),
        "wo": params["wo"].astype(wd),
        "bo": params["bo"].reshape(1, -1).astype(jnp.float32),
        "w1": params["w1"].astype(wd),
        "b1": params["b1"].reshape(1, -1).astype(jnp.float32),
        "w2": params["w2"].astype(wd),
        "b2": params["b2"].reshape(1, -1).astype(jnp.float32),
        "ln1_g": params["ln1_g"].reshape(1, -1).astype(jnp.float32),
        "ln1_b": params["ln1_b"].reshape(1, -1).astype(jnp.float32),
        "ln2_g": params["ln2_g"].reshape(1, -1).astype(jnp.float32),
        "ln2_b": params["ln2_b"].reshape(1, -1).astype(jnp.float32),
    }


# --------------------------- EncoderLayer forward -----------------------------

@functools.partial(jax.jit, static_argnames=("num_heads", "approx_recip"))
def encoder_layer_forward(x, prep, num_heads, approx_recip=False):
    """x: (B, S, D) float32 -> (B, S, D) float32. Dropout = identity (eval mode)."""
    B, S, D = x.shape
    M = B * S
    x2d = x.reshape(M, D)
    compute_dtype = prep["wqkv"].dtype        # f32 (strict) or bf16 (MXU operands)

    tile_m = _row_tile(M)

    # Fused Q/K/V projection: one (D, 3D) matmul, x read once, three lane-dense outputs.
    q2d, k2d, v2d = fused_qkv_projection(x2d, prep["wqkv"], prep["bqkv"], tile_m=tile_m)

    # Multi-head attention tiled over (batch, query rows); per-head direct stores.
    attn = multi_head_attention_core(
        q2d.reshape(B, S, D), k2d.reshape(B, S, D), v2d.reshape(B, S, D),
        num_heads, compute_dtype=compute_dtype, approx_recip=approx_recip)

    # Output projection + residual + LayerNorm 1 (fused epilogue).
    x_ln1 = proj_add_layernorm(attn.reshape(M, D), x2d, prep["wo"], prep["bo"],
                               prep["ln1_g"], prep["ln1_b"], tile_m=tile_m)

    # FFN (fc1 -> ReLU -> fc2, tiled over d_ff) + residual + LayerNorm 2.
    x_out = ffn_add_layernorm(x_ln1, prep["w1"], prep["b1"], prep["w2"], prep["b2"],
                              prep["ln2_g"], prep["ln2_b"], tile_m=tile_m)

    return x_out.reshape(B, S, D)


# ----------------------------- Pure-JAX reference -----------------------------

def encoder_layer_reference(x, params, num_heads):
    B, S, D = x.shape
    dk = D // num_heads
    x2d = x.reshape(B * S, D)

    def lin(t, w, b):
        return t @ w + b

    q = lin(x2d, params["wq"], params["bq"]).reshape(B, S, num_heads, dk).transpose(0, 2, 1, 3)
    k = lin(x2d, params["wk"], params["bk"]).reshape(B, S, num_heads, dk).transpose(0, 2, 1, 3)
    v = lin(x2d, params["wv"], params["bv"]).reshape(B, S, num_heads, dk).transpose(0, 2, 1, 3)
    s = jnp.einsum("bhqd,bhkd->bhqk", q, k) / jnp.sqrt(dk)
    p = jax.nn.softmax(s, axis=-1)
    a = jnp.einsum("bhqk,bhkd->bhqd", p, v).transpose(0, 2, 1, 3).reshape(B * S, D)
    a = lin(a, params["wo"], params["bo"])

    def ln(z, g, b, eps=1e-5):
        m = jnp.mean(z, axis=-1, keepdims=True)
        var = jnp.mean((z - m) ** 2, axis=-1, keepdims=True)
        return (z - m) * lax.rsqrt(var + eps) * g + b

    x2d = ln(x2d + a, params["ln1_g"], params["ln1_b"])
    h = jnp.maximum(lin(x2d, params["w1"], params["b1"]), 0.0)
    f = lin(h, params["w2"], params["b2"])
    x2d = ln(x2d + f, params["ln2_g"], params["ln2_b"])
    return x2d.reshape(B, S, D)


# ----------------------------------- main --------------------------------------

if __name__ == "__main__":
    B, S, D, H, F = 2, 8, 32, 4, 64     # batch, seq, d_model, num_heads, d_ff
    key = jax.random.PRNGKey(0)
    ks = jax.random.split(key, 12)

    def w(k, shape, scale=0.05):
        return (scale * jax.random.normal(k, shape)).astype(jnp.float32)

    params = {
        "wq": w(ks[0], (D, D)), "bq": w(ks[1], (D,)),
        "wk": w(ks[2], (D, D)), "bk": w(ks[3], (D,)),
        "wv": w(ks[4], (D, D)), "bv": w(ks[5], (D,)),
        "wo": w(ks[6], (D, D)), "bo": w(ks[7], (D,)),
        "w1": w(ks[8], (D, F)), "b1": w(ks[9], (F,)),
        "w2": w(ks[10], (F, D)), "b2": w(ks[11], (D,)),
        "ln1_g": jnp.ones((D,), jnp.float32), "ln1_b": jnp.zeros((D,), jnp.float32),
        "ln2_g": jnp.ones((D,), jnp.float32), "ln2_b": jnp.zeros((D,), jnp.float32),
    }

    x = jax.random.normal(jax.random.PRNGKey(42), (B, S, D), dtype=jnp.float32)
    ref = encoder_layer_reference(x, params, H)

    # Strict f32 path (matmul operands kept f32 so the 1e-4 check holds).
    prep_f32 = prepare_encoder_params(params, compute_dtype=jnp.float32)
    out = jax.block_until_ready(encoder_layer_forward(x, prep_f32, H))
    assert out.shape == (B, S, D)
    assert jnp.allclose(out, ref, atol=1e-4, rtol=1e-4), "f32 path mismatch vs reference"

    # bf16 MXU-operand path (f32 accumulate, f32 softmax/LN, EUP approx reciprocal);
    # validated with a looser tolerance since operands are rounded to bf16.
    prep_bf16 = prepare_encoder_params(params, compute_dtype=jnp.bfloat16)
    out_bf16 = jax.block_until_ready(
        encoder_layer_forward(x, prep_bf16, H, approx_recip=True))
    assert jnp.allclose(out_bf16, ref, atol=5e-2, rtol=5e-2), "bf16 path mismatch vs reference"

    print("KERNEL_OK")
</pallas_src>

<mosaic_0001>
module attributes {stable_mosaic.version = 11 : i64} {
  func.func @_probe_copy_kernel(%arg0: i32, %arg1: memref<8x128xf32, #tpu.memory_space<vmem>>, %arg2: memref<8x128xf32, #tpu.memory_space<vmem>>) attributes {dimension_semantics = [#tpu.dimension_semantics<arbitrary>], iteration_bounds = array<i64: 2>, scalar_prefetch = 0 : i64, scratch_operands = 0 : i64, tpu.core_type = #tpu.core_type<tc>, window_params = [{pipeline_mode = #tpu.pipeline_mode<synchronous>, transform_indices = @transform_0, window_bounds = array<i64: 8, 128>}, {transform_indices = @transform_1, window_bounds = array<i64: 8, 128>}]} {
    %c0 = arith.constant 0 : index
    %c0_0 = arith.constant 0 : index
    %0 = vector.load %arg1[%c0, %c0_0] : memref<8x128xf32, #tpu.memory_space<vmem>>, vector<8x128xf32>
    %c0_1 = arith.constant 0 : index
    %c0_2 = arith.constant 0 : index
    %1 = vector.load %arg2[%c0_1, %c0_2] : memref<8x128xf32, #tpu.memory_space<vmem>>, vector<8x128xf32>
    tpu.vector_store %arg2[%c0_1, %c0_2], %0 {strides = array<i32>} : memref<8x128xf32, #tpu.memory_space<vmem>>, vector<8x128xf32>,
    return
  }
  func.func @transform_0(%arg0: i32) -> (i32, i32) {
    %c0_i32 = arith.constant 0 : i32
    %c0_i32_0 = arith.constant 0 : i32
    %c0_i32_1 = arith.constant 0 : i32
    return %c0_i32, %c0_i32_0 : i32, i32
  }
  func.func @transform_1(%arg0: i32) -> (i32, i32) {
    %c0_i32 = arith.constant 0 : i32
    %c0_i32_0 = arith.constant 0 : i32
    return %arg0, %c0_i32 : i32, i32
  }
}

module attributes {stable_mosaic.version = 11 : i64} {
  func.func @_ffn_add_ln_kernel(%arg0: i32, %arg1: i32, %arg2: memref<16x32xf32, #tpu.memory_space<vmem>>, %arg3: memref<32x64xf32, #tpu.memory_space<vmem>>, %arg4: memref<1x64xf32, #tpu.memory_space<vmem>>, %arg5: memref<64x32xf32, #tpu.memory_space<vmem>>, %arg6: memref<1x32xf32, #tpu.memory_space<vmem>>, %arg7: memref<1x32xf32, #tpu.memory_space<vmem>>, %arg8: memref<1x32xf32, #tpu.memory_space<vmem>>, %arg9: memref<16x32xf32, #tpu.memory_space<vmem>>, %arg10: memref<16x32xf32, #tpu.memory_space<vmem>>) attributes {dimension_semantics = [#tpu.dimension_semantics<parallel>, #tpu.dimension_semantics<arbitrary>], iteration_bounds = array<i64: 1, 1>, scalar_prefetch = 0 : i64, scratch_operands = 1 : i64, tpu.core_type = #tpu.core_type<tc>, window_params = [{transform_indices = @transform_0, window_bounds = array<i64: 16, 32>}, {transform_indices = @transform_1, window_bounds = array<i64: 32, 64>}, {transform_indices = @transform_2, window_bounds = array<i64: 1, 64>}, {transform_indices = @transform_3, window_bounds = array<i64: 64, 32>}, {pipeline_mode = #tpu.pipeline_mode<synchronous>, transform_indices = @transform_4, window_bounds = array<i64: 1, 32>}, {pipeline_mode = #tpu.pipeline_mode<synchronous>, transform_indices = @transform_5, window_bounds = array<i64: 1, 32>}, {pipeline_mode = #tpu.pipeline_mode<synchronous>, transform_indices = @transform_6, window_bounds = array<i64: 1, 32>}, {transform_indices = @transform_7, window_bounds = array<i64: 16, 32>}]} {
    %c0_i32 = arith.constant 0 : i32
    %0 = arith.cmpi eq, %arg1, %c0_i32 : i32
    %1 = arith.extui %0 : i1 to i32
    %c0_i32_0 = arith.constant 0 : i32
    %2 = arith.cmpi ne, %1, %c0_i32_0 : i32
    scf.if %2 {
      %cst_16 = arith.constant 0.000000e+00 : f32
      %19 = vector.broadcast %cst_16 : f32 to vector<16x32xf32>
      %c0_17 = arith.constant 0 : index
      %c0_18 = arith.constant 0 : index
      %20 = vector.load %arg10[%c0_17, %c0_18] : memref<16x32xf32, #tpu.memory_space<vmem>>, vector<16x32xf32>
      tpu.vector_store %arg10[%c0_17, %c0_18], %19 {strides = array<i32>} : memref<16x32xf32, #tpu.memory_space<vmem>>, vector<16x32xf32>,
    } else {
    }
    %c0 = arith.constant 0 : index
    %c0_1 = arith.constant 0 : index
    %3 = vector.load %arg2[%c0, %c0_1] : memref<16x32xf32, #tpu.memory_space<vmem>>, vector<16x32xf32>
    %c0_2 = arith.constant 0 : index
    %c0_3 = arith.constant 0 : index
    %4 = vector.load %arg3[%c0_2, %c0_3] : memref<32x64xf32, #tpu.memory_space<vmem>>, vector<32x64xf32>
    %cst = arith.constant dense<0.000000e+00> : vector<16x64xf32>
    %5 = tpu.matmul %3, %4, %cst {dimension_numbers = #tpu.dot_dimension_numbers<[1], [0], [0], [1], [0, 0, 1, 1], [], []>} : vector<16x32xf32>, vector<32x64xf32>, vector<16x64xf32> -> vector<16x64xf32>
    %c0_4 = arith.constant 0 : index
    %c0_5 = arith.constant 0 : index
    %6 = vector.load %arg4[%c0_4, %c0_5] : memref<1x64xf32, #tpu.memory_space<vmem>>, vector<1x64xf32>
    %7 = vector.broadcast %6 : vector<1x64xf32> to vector<16x64xf32>
    %8 = arith.addf %5, %7 : vector<16x64xf32>
    %cst_6 = arith.constant 0.000000e+00 : f32
    %9 = vector.broadcast %cst_6 : f32 to vector<16x64xf32>
    %10 = arith.maximumf %8, %9 : vector<16x64xf32>
    %c0_7 = arith.constant 0 : index
    %c0_8 = arith.constant 0 : index
    %11 = vector.load %arg10[%c0_7, %c0_8] : memref<16x32xf32, #tpu.memory_space<vmem>>, vector<16x32xf32>
    %c0_9 = arith.constant 0 : index
    %c0_10 = arith.constant 0 : index
    %12 = vector.load %arg5[%c0_9, %c0_10] : memref<64x32xf32, #tpu.memory_space<vmem>>, vector<64x32xf32>
    %cst_11 = arith.constant dense<0.000000e+00> : vector<16x32xf32>
    %13 = tpu.matmul %10, %12, %cst_11 {dimension_numbers = #tpu.dot_dimension_numbers<[1], [0], [0], [1], [0, 0, 1, 1], [], []>} : vector<16x64xf32>, vector<64x32xf32>, vector<16x32xf32> -> vector<16x32xf32>
    %14 = arith.addf %11, %13 : vector<16x32xf32>
    %c0_12 = arith.constant 0 : index
    %c0_13 = arith.constant 0 : index
    %15 = vector.load %arg10[%c0_12, %c0_13] : memref<16x32xf32, #tpu.memory_space<vmem>>, vector<16x32xf32>
    tpu.vector_store %arg10[%c0_12, %c0_13], %14 {strides = array<i32>} : memref<16x32xf32, #tpu.memory_space<vmem>>, vector<16x32xf32>,
    %c0_i32_14 = arith.constant 0 : i32
    %16 = arith.cmpi eq, %arg1, %c0_i32_14 : i32
    %17 = arith.extui %16 : i1 to i32
    %c0_i32_15 = arith.constant 0 : i32
    %18 = arith.cmpi ne, %17, %c0_i32_15 : i32
    scf.if %18 {
      %c0_16 = arith.constant 0 : index
      %c0_17 = arith.constant 0 : index
      %19 = vector.load %arg10[%c0_16, %c0_17] : memref<16x32xf32, #tpu.memory_space<vmem>>, vector<16x32xf32>
      %20 = arith.addf %3, %19 : vector<16x32xf32>
      %c0_18 = arith.constant 0 : index
      %c0_19 = arith.constant 0 : index
      %21 = vector.load %arg6[%c0_18, %c0_19] : memref<1x32xf32, #tpu.memory_space<vmem>>, vector<1x32xf32>
      %22 = vector.broadcast %21 : vector<1x32xf32> to vector<16x32xf32>
      %23 = arith.addf %20, %22 : vector<16x32xf32>
      %cst_20 = arith.constant dense<0.000000e+00> : vector<16xf32>
      %24 = vector.multi_reduction <add>, %23, %cst_20 [1] : vector<16x32xf32> to vector<16xf32>
      %25 = vector.shape_cast %24 : vector<16xf32> to vector<16x1xf32>
      %cst_21 = arith.constant 3.200000e+01 : f32
      %26 = vector.broadcast %cst_21 : f32 to vector<16x1xf32>
      %27 = arith.divf %25, %26 : vector<16x1xf32>
      %28 = vector.broadcast %27 : vector<16x1xf32> to vector<16x32xf32>
      %29 = arith.subf %23, %28 : vector<16x32xf32>
      %30 = arith.mulf %29, %29 : vector<16x32xf32>
      %cst_22 = arith.constant dense<0.000000e+00> : vector<16xf32>
      %31 = vector.multi_reduction <add>, %30, %cst_22 [1] : vector<16x32xf32> to vector<16xf32>
      %32 = vector.shape_cast %31 : vector<16xf32> to vector<16x1xf32>
      %cst_23 = arith.constant 3.200000e+01 : f32
      %33 = vector.broadcast %cst_23 : f32 to vector<16x1xf32>
      %34 = arith.divf %32, %33 : vector<16x1xf32>
      %35 = vector.broadcast %27 : vector<16x1xf32> to vector<16x32xf32>
      %36 = arith.subf %23, %35 : vector<16x32xf32>
      %cst_24 = arith.constant 9.99999974E-6 : f32
      %37 = vector.broadcast %cst_24 : f32 to vector<16x1xf32>
      %38 = arith.addf %34, %37 : vector<16x1xf32>
      %39 = math.rsqrt %38 : vector<16x1xf32>
      %40 = vector.broadcast %39 : vector<16x1xf32> to vector<16x32xf32>
      %41 = arith.mulf %36, %40 : vector<16x32xf32>
      %c0_25 = arith.constant 0 : index
      %c0_26 = arith.constant 0 : index
      %42 = vector.load %arg7[%c0_25, %c0_26] : memref<1x32xf32, #tpu.memory_space<vmem>>, vector<1x32xf32>
      %43 = vector.broadcast %42 : vector<1x32xf32> to vector<16x32xf32>
      %44 = arith.mulf %41, %43 : vector<16x32xf32>
      %c0_27 = arith.constant 0 : index
      %c0_28 = arith.constant 0 : index
      %45 = vector.load %arg8[%c0_27, %c0_28] : memref<1x32xf32, #tpu.memory_space<vmem>>, vector<1x32xf32>
      %46 = vector.broadcast %45 : vector<1x32xf32> to vector<16x32xf32>
      %47 = arith.addf %44, %46 : vector<16x32xf32>
      %c0_29 = arith.constant 0 : index
      %c0_30 = arith.constant 0 : index
      %48 = vector.load %arg9[%c0_29, %c0_30] : memref<16x32xf32, #tpu.memory_space<vmem>>, vector<16x32xf32>
      tpu.vector_store %arg9[%c0_29, %c0_30], %47 {strides = array<i32>} : memref<16x32xf32, #tpu.memory_space<vmem>>, vector<16x32xf32>,
    } else {
    }
    return
  }
  func.func @transform_0(%arg0: i32, %arg1: i32) -> (i32, i32) {
    %c0_i32 = arith.constant 0 : i32
    %c0_i32_0 = arith.constant 0 : i32
    return %arg0, %c0_i32 : i32, i32
  }
  func.func @transform_1(%arg0: i32, %arg1: i32) -> (i32, i32) {
    %c0_i32 = arith.constant 0 : i32
    %c0_i32_0 = arith.constant 0 : i32
    return %c0_i32, %arg1 : i32, i32
  }
  func.func @transform_2(%arg0: i32, %arg1: i32) -> (i32, i32) {
    %c0_i32 = arith.constant 0 : i32
    %c0_i32_0 = arith.constant 0 : i32
    return %c0_i32, %arg1 : i32, i32
  }
  func.func @transform_3(%arg0: i32, %arg1: i32) -> (i32, i32) {
    %c0_i32 = arith.constant 0 : i32
    %c0_i32_0 = arith.constant 0 : i32
    return %arg1, %c0_i32 : i32, i32
  }
  func.func @transform_4(%arg0: i32, %arg1: i32) -> (i32, i32) {
    %c0_i32 = arith.constant 0 : i32
    %c0_i32_0 = arith.constant 0 : i32
    %c0_i32_1 = arith.constant 0 : i32
    return %c0_i32, %c0_i32_0 : i32, i32
  }
  func.func @transform_5(%arg0: i32, %arg1: i32) -> (i32, i32) {
    %c0_i32 = arith.constant 0 : i32
    %c0_i32_0 = arith.constant 0 : i32
    %c0_i32_1 = arith.constant 0 : i32
    return %c0_i32, %c0_i32_0 : i32, i32
  }
  func.func @transform_6(%arg0: i32, %arg1: i32) -> (i32, i32) {
    %c0_i32 = arith.constant 0 : i32
    %c0_i32_0 = arith.constant 0 : i32
    %c0_i32_1 = arith.constant 0 : i32
    return %c0_i32, %c0_i32_0 : i32, i32
  }
  func.func @transform_7(%arg0: i32, %arg1: i32) -> (i32, i32) {
    %c0_i32 = arith.constant 0 : i32
    %c0_i32_0 = arith.constant 0 : i32
    return %arg0, %c0_i32 : i32, i32
  }
}

module attributes {stable_mosaic.version = 11 : i64} {
  func.func @_qkv_proj_kernel(%arg0: i32, %arg1: memref<16x32xf32, #tpu.memory_space<vmem>>, %arg2: memref<32x96xf32, #tpu.memory_space<vmem>>, %arg3: memref<1x96xf32, #tpu.memory_space<vmem>>, %arg4: memref<16x32xf32, #tpu.memory_space<vmem>>, %arg5: memref<16x32xf32, #tpu.memory_space<vmem>>, %arg6: memref<16x32xf32, #tpu.memory_space<vmem>>) attributes {dimension_semantics = [#tpu.dimension_semantics<parallel>], iteration_bounds = array<i64: 1>, scalar_prefetch = 0 : i64, scratch_operands = 0 : i64, tpu.core_type = #tpu.core_type<tc>, window_params = [{transform_indices = @transform_0, window_bounds = array<i64: 16, 32>}, {pipeline_mode = #tpu.pipeline_mode<synchronous>, transform_indices = @transform_1, window_bounds = array<i64: 32, 96>}, {pipeline_mode = #tpu.pipeline_mode<synchronous>, transform_indices = @transform_2, window_bounds = array<i64: 1, 96>}, {transform_indices = @transform_3, window_bounds = array<i64: 16, 32>}, {transform_indices = @transform_4, window_bounds = array<i64: 16, 32>}, {transform_indices = @transform_5, window_bounds = array<i64: 16, 32>}]} {
    %c0 = arith.constant 0 : index
    %c0_0 = arith.constant 0 : index
    %0 = vector.load %arg1[%c0, %c0_0] : memref<16x32xf32, #tpu.memory_space<vmem>>, vector<16x32xf32>
    %c0_1 = arith.constant 0 : index
    %c0_2 = arith.constant 0 : index
    %1 = vector.load %arg2[%c0_1, %c0_2] : memref<32x96xf32, #tpu.memory_space<vmem>>, vector<32x96xf32>
    %cst = arith.constant dense<0.000000e+00> : vector<16x96xf32>
    %2 = tpu.matmul %0, %1, %cst {dimension_numbers = #tpu.dot_dimension_numbers<[1], [0], [0], [1], [0, 0, 1, 1], [], []>} : vector<16x32xf32>, vector<32x96xf32>, vector<16x96xf32> -> vector<16x96xf32>
    %c0_3 = arith.constant 0 : index
    %c0_4 = arith.constant 0 : index
    %3 = vector.load %arg3[%c0_3, %c0_4] : memref<1x96xf32, #tpu.memory_space<vmem>>, vector<1x96xf32>
    %4 = vector.broadcast %3 : vector<1x96xf32> to vector<16x96xf32>
    %5 = arith.addf %2, %4 : vector<16x96xf32>
    %6 = vector.extract_strided_slice %5 {offsets = [0, 0], sizes = [16, 32], strides = [1, 1]} : vector<16x96xf32> to vector<16x32xf32>
    %c0_5 = arith.constant 0 : index
    %c0_6 = arith.constant 0 : index
    %7 = vector.load %arg4[%c0_5, %c0_6] : memref<16x32xf32, #tpu.memory_space<vmem>>, vector<16x32xf32>
    tpu.vector_store %arg4[%c0_5, %c0_6], %6 {strides = array<i32>} : memref<16x32xf32, #tpu.memory_space<vmem>>, vector<16x32xf32>,
    %8 = vector.extract_strided_slice %5 {offsets = [0, 32], sizes = [16, 32], strides = [1, 1]} : vector<16x96xf32> to vector<16x32xf32>
    %c0_7 = arith.constant 0 : index
    %c0_8 = arith.constant 0 : index
    %9 = vector.load %arg5[%c0_7, %c0_8] : memref<16x32xf32, #tpu.memory_space<vmem>>, vector<16x32xf32>
    tpu.vector_store %arg5[%c0_7, %c0_8], %8 {strides = array<i32>} : memref<16x32xf32, #tpu.memory_space<vmem>>, vector<16x32xf32>,
    %10 = vector.extract_strided_slice %5 {offsets = [0, 64], sizes = [16, 32], strides = [1, 1]} : vector<16x96xf32> to vector<16x32xf32>
    %c0_9 = arith.constant 0 : index
    %c0_10 = arith.constant 0 : index
    %11 = vector.load %arg6[%c0_9, %c0_10] : memref<16x32xf32, #tpu.memory_space<vmem>>, vector<16x32xf32>
    tpu.vector_store %arg6[%c0_9, %c0_10], %10 {strides = array<i32>} : memref<16x32xf32, #tpu.memory_space<vmem>>, vector<16x32xf32>,
    return
  }
  func.func @transform_0(%arg0: i32) -> (i32, i32) {
    %c0_i32 = arith.constant 0 : i32
    %c0_i32_0 = arith.constant 0 : i32
    return %arg0, %c0_i32 : i32, i32
  }
  func.func @transform_1(%arg0: i32) -> (i32, i32) {
    %c0_i32 = arith.constant 0 : i32
    %c0_i32_0 = arith.constant 0 : i32
    %c0_i32_1 = arith.constant 0 : i32
    return %c0_i32, %c0_i32_0 : i32, i32
  }
  func.func @transform_2(%arg0: i32) -> (i32, i32) {
    %c0_i32 = arith.constant 0 : i32
    %c0_i32_0 = arith.constant 0 : i32
    %c0_i32_1 = arith.constant 0 : i32
    return %c0_i32, %c0_i32_0 : i32, i32
  }
  func.func @transform_3(%arg0: i32) -> (i32, i32) {
    %c0_i32 = arith.constant 0 : i32
    %c0_i32_0 = arith.constant 0 : i32
    return %arg0, %c0_i32 : i32, i32
  }
  func.func @transform_4(%arg0: i32) -> (i32, i32) {
    %c0_i32 = arith.constant 0 : i32
    %c0_i32_0 = arith.constant 0 : i32
    return %arg0, %c0_i32 : i32, i32
  }
  func.func @transform_5(%arg0: i32) -> (i32, i32) {
    %c0_i32 = arith.constant 0 : i32
    %c0_i32_0 = arith.constant 0 : i32
    return %arg0, %c0_i32 : i32, i32
  }
}

module attributes {stable_mosaic.version = 11 : i64} {
  func.func @_proj_add_ln_kernel(%arg0: i32, %arg1: memref<16x32xf32, #tpu.memory_space<vmem>>, %arg2: memref<16x32xf32, #tpu.memory_space<vmem>>, %arg3: memref<32x32xf32, #tpu.memory_space<vmem>>, %arg4: memref<1x32xf32, #tpu.memory_space<vmem>>, %arg5: memref<1x32xf32, #tpu.memory_space<vmem>>, %arg6: memref<1x32xf32, #tpu.memory_space<vmem>>, %arg7: memref<16x32xf32, #tpu.memory_space<vmem>>) attributes {dimension_semantics = [#tpu.dimension_semantics<parallel>], iteration_bounds = array<i64: 1>, scalar_prefetch = 0 : i64, scratch_operands = 0 : i64, tpu.core_type = #tpu.core_type<tc>, window_params = [{transform_indices = @transform_0, window_bounds = array<i64: 16, 32>}, {transform_indices = @transform_1, window_bounds = array<i64: 16, 32>}, {pipeline_mode = #tpu.pipeline_mode<synchronous>, transform_indices = @transform_2, window_bounds = array<i64: 32, 32>}, {pipeline_mode = #tpu.pipeline_mode<synchronous>, transform_indices = @transform_3, window_bounds = array<i64: 1, 32>}, {pipeline_mode = #tpu.pipeline_mode<synchronous>, transform_indices = @transform_4, window_bounds = array<i64: 1, 32>}, {pipeline_mode = #tpu.pipeline_mode<synchronous>, transform_indices = @transform_5, window_bounds = array<i64: 1, 32>}, {transform_indices = @transform_6, window_bounds = array<i64: 16, 32>}]} {
    %c0 = arith.constant 0 : index
    %c0_0 = arith.constant 0 : index
    %0 = vector.load %arg1[%c0, %c0_0] : memref<16x32xf32, #tpu.memory_space<vmem>>, vector<16x32xf32>
    %c0_1 = arith.constant 0 : index
    %c0_2 = arith.constant 0 : index
    %1 = vector.load %arg3[%c0_1, %c0_2] : memref<32x32xf32, #tpu.memory_space<vmem>>, vector<32x32xf32>
    %cst = arith.constant dense<0.000000e+00> : vector<16x32xf32>
    %2 = tpu.matmul %0, %1, %cst {dimension_numbers = #tpu.dot_dimension_numbers<[1], [0], [0], [1], [0, 0, 1, 1], [], []>} : vector<16x32xf32>, vector<32x32xf32>, vector<16x32xf32> -> vector<16x32xf32>
    %c0_3 = arith.constant 0 : index
    %c0_4 = arith.constant 0 : index
    %3 = vector.load %arg4[%c0_3, %c0_4] : memref<1x32xf32, #tpu.memory_space<vmem>>, vector<1x32xf32>
    %4 = vector.broadcast %3 : vector<1x32xf32> to vector<16x32xf32>
    %5 = arith.addf %2, %4 : vector<16x32xf32>
    %c0_5 = arith.constant 0 : index
    %c0_6 = arith.constant 0 : index
    %6 = vector.load %arg2[%c0_5, %c0_6] : memref<16x32xf32, #tpu.memory_space<vmem>>, vector<16x32xf32>
    %7 = arith.addf %6, %5 : vector<16x32xf32>
    %cst_7 = arith.constant dense<0.000000e+00> : vector<16xf32>
    %8 = vector.multi_reduction <add>, %7, %cst_7 [1] : vector<16x32xf32> to vector<16xf32>
    %9 = vector.shape_cast %8 : vector<16xf32> to vector<16x1xf32>
    %cst_8 = arith.constant 3.200000e+01 : f32
    %10 = vector.broadcast %cst_8 : f32 to vector<16x1xf32>
    %11 = arith.divf %9, %10 : vector<16x1xf32>
    %12 = vector.broadcast %11 : vector<16x1xf32> to vector<16x32xf32>
    %13 = arith.subf %7, %12 : vector<16x32xf32>
    %14 = arith.mulf %13, %13 : vector<16x32xf32>
    %cst_9 = arith.constant dense<0.000000e+00> : vector<16xf32>
    %15 = vector.multi_reduction <add>, %14, %cst_9 [1] : vector<16x32xf32> to vector<16xf32>
    %16 = vector.shape_cast %15 : vector<16xf32> to vector<16x1xf32>
    %cst_10 = arith.constant 3.200000e+01 : f32
    %17 = vector.broadcast %cst_10 : f32 to vector<16x1xf32>
    %18 = arith.divf %16, %17 : vector<16x1xf32>
    %19 = vector.broadcast %11 : vector<16x1xf32> to vector<16x32xf32>
    %20 = arith.subf %7, %19 : vector<16x32xf32>
    %cst_11 = arith.constant 9.99999974E-6 : f32
    %21 = vector.broadcast %cst_11 : f32 to vector<16x1xf32>
    %22 = arith.addf %18, %21 : vector<16x1xf32>
    %23 = math.rsqrt %22 : vector<16x1xf32>
    %24 = vector.broadcast %23 : vector<16x1xf32> to vector<16x32xf32>
    %25 = arith.mulf %20, %24 : vector<16x32xf32>
    %c0_12 = arith.constant 0 : index
    %c0_13 = arith.constant 0 : index
    %26 = vector.load %arg5[%c0_12, %c0_13] : memref<1x32xf32, #tpu.memory_space<vmem>>, vector<1x32xf32>
    %27 = vector.broadcast %26 : vector<1x32xf32> to vector<16x32xf32>
    %28 = arith.mulf %25, %27 : vector<16x32xf32>
    %c0_14 = arith.constant 0 : index
    %c0_15 = arith.constant 0 : index
    %29 = vector.load %arg6[%c0_14, %c0_15] : memref<1x32xf32, #tpu.memory_space<vmem>>, vector<1x32xf32>
    %30 = vector.broadcast %29 : vector<1x32xf32> to vector<16x32xf32>
    %31 = arith.addf %28, %30 : vector<16x32xf32>
    %c0_16 = arith.constant 0 : index
    %c0_17 = arith.constant 0 : index
    %32 = vector.load %arg7[%c0_16, %c0_17] : memref<16x32xf32, #tpu.memory_space<vmem>>, vector<16x32xf32>
    tpu.vector_store %arg7[%c0_16, %c0_17], %31 {strides = array<i32>} : memref<16x32xf32, #tpu.memory_space<vmem>>, vector<16x32xf32>,
    return
  }
  func.func @transform_0(%arg0: i32) -> (i32, i32) {
    %c0_i32 = arith.constant 0 : i32
    %c0_i32_0 = arith.constant 0 : i32
    return %arg0, %c0_i32 : i32, i32
  }
  func.func @transform_1(%arg0: i32) -> (i32, i32) {
    %c0_i32 = arith.constant 0 : i32
    %c0_i32_0 = arith.constant 0 : i32
    return %arg0, %c0_i32 : i32, i32
  }
  func.func @transform_2(%arg0: i32) -> (i32, i32) {
    %c0_i32 = arith.constant 0 : i32
    %c0_i32_0 = arith.constant 0 : i32
    %c0_i32_1 = arith.constant 0 : i32
    return %c0_i32, %c0_i32_0 : i32, i32
  }
  func.func @transform_3(%arg0: i32) -> (i32, i32) {
    %c0_i32 = arith.constant 0 : i32
    %c0_i32_0 = arith.constant 0 : i32
    %c0_i32_1 = arith.constant 0 : i32
    return %c0_i32, %c0_i32_0 : i32, i32
  }
  func.func @transform_4(%arg0: i32) -> (i32, i32) {
    %c0_i32 = arith.constant 0 : i32
    %c0_i32_0 = arith.constant 0 : i32
    %c0_i32_1 = arith.constant 0 : i32
    return %c0_i32, %c0_i32_0 : i32, i32
  }
  func.func @transform_5(%arg0: i32) -> (i32, i32) {
    %c0_i32 = arith.constant 0 : i32
    %c0_i32_0 = arith.constant 0 : i32
    %c0_i32_1 = arith.constant 0 : i32
    return %c0_i32, %c0_i32_0 : i32, i32
  }
  func.func @transform_6(%arg0: i32) -> (i32, i32) {
    %c0_i32 = arith.constant 0 : i32
    %c0_i32_0 = arith.constant 0 : i32
    return %arg0, %c0_i32 : i32, i32
  }
}

module attributes {stable_mosaic.version = 11 : i64} {
  func.func @_mha_core_kernel(%arg0: i32, %arg1: i32, %arg2: memref<1x8x32xf32, #tpu.memory_space<vmem>>, %arg3: memref<1x8x32xf32, #tpu.memory_space<vmem>>, %arg4: memref<1x8x32xf32, #tpu.memory_space<vmem>>, %arg5: memref<1x8x32xf32, #tpu.memory_space<vmem>>) attributes {dimension_semantics = [#tpu.dimension_semantics<parallel>, #tpu.dimension_semantics<parallel>], iteration_bounds = array<i64: 2, 1>, scalar_prefetch = 0 : i64, scratch_operands = 0 : i64, tpu.core_type = #tpu.core_type<tc>, window_params = [{transform_indices = @transform_0, window_bounds = array<i64: 1, 8, 32>}, {transform_indices = @transform_1, window_bounds = array<i64: 1, 8, 32>}, {transform_indices = @transform_2, window_bounds = array<i64: 1, 8, 32>}, {transform_indices = @transform_3, window_bounds = array<i64: 1, 8, 32>}]} {
    %c0 = arith.constant 0 : index
    %c0_0 = arith.constant 0 : index
    %c0_1 = arith.constant 0 : index
    %0 = vector.load %arg2[%c0, %c0_0, %c0_1] : memref<1x8x32xf32, #tpu.memory_space<vmem>>, vector<1x8x32xf32>
    %1 = vector.shape_cast %0 : vector<1x8x32xf32> to vector<8x32xf32>
    %c0_2 = arith.constant 0 : index
    %c0_3 = arith.constant 0 : index
    %c0_4 = arith.constant 0 : index
    %2 = vector.load %arg3[%c0_2, %c0_3, %c0_4] : memref<1x8x32xf32, #tpu.memory_space<vmem>>, vector<1x8x32xf32>
    %3 = vector.shape_cast %2 : vector<1x8x32xf32> to vector<8x32xf32>
    %c0_5 = arith.constant 0 : index
    %c0_6 = arith.constant 0 : index
    %c0_7 = arith.constant 0 : index
    %4 = vector.load %arg4[%c0_5, %c0_6, %c0_7] : memref<1x8x32xf32, #tpu.memory_space<vmem>>, vector<1x8x32xf32>
    %5 = vector.shape_cast %4 : vector<1x8x32xf32> to vector<8x32xf32>
    %6 = vector.extract_strided_slice %1 {offsets = [0, 0], sizes = [8, 8], strides = [1, 1]} : vector<8x32xf32> to vector<8x8xf32>
    %cst = arith.constant 0.353553385 : f32
    %7 = vector.broadcast %cst : f32 to vector<8x8xf32>
    %8 = arith.mulf %6, %7 : vector<8x8xf32>
    %9 = vector.extract_strided_slice %3 {offsets = [0, 0], sizes = [8, 8], strides = [1, 1]} : vector<8x32xf32> to vector<8x8xf32>
    %cst_8 = arith.constant dense<0.000000e+00> : vector<8x8xf32>
    %10 = tpu.matmul %8, %9, %cst_8 {dimension_numbers = #tpu.dot_dimension_numbers<[1], [1], [0], [0], [0, 0, 1, 0], [], []>} : vector<8x8xf32>, vector<8x8xf32>, vector<8x8xf32> -> vector<8x8xf32>
    %cst_9 = arith.constant dense<0xFF800000> : vector<8xf32>
    %11 = vector.multi_reduction <maximumf>, %10, %cst_9 [1] : vector<8x8xf32> to vector<8xf32>
    %12 = vector.shape_cast %11 : vector<8xf32> to vector<8x1xf32>
    %13 = vector.broadcast %12 : vector<8x1xf32> to vector<8x8xf32>
    %14 = arith.subf %10, %13 : vector<8x8xf32>
    %15 = math.exp %14 : vector<8x8xf32>
    %cst_10 = arith.constant dense<0.000000e+00> : vector<8xf32>
    %16 = vector.multi_reduction <add>, %15, %cst_10 [1] : vector<8x8xf32> to vector<8xf32>
    %17 = vector.shape_cast %16 : vector<8xf32> to vector<8x1xf32>
    %18 = tpu.reciprocal %17 : vector<8x1xf32> -> vector<8x1xf32>
    %19 = vector.broadcast %18 : vector<8x1xf32> to vector<8x8xf32>
    %20 = arith.mulf %15, %19 : vector<8x8xf32>
    %21 = vector.extract_strided_slice %5 {offsets = [0, 0], sizes = [8, 8], strides = [1, 1]} : vector<8x32xf32> to vector<8x8xf32>
    %cst_11 = arith.constant dense<0.000000e+00> : vector<8x8xf32>
    %22 = tpu.matmul %20, %21, %cst_11 {dimension_numbers = #tpu.dot_dimension_numbers<[1], [0], [0], [1], [0, 0, 1, 1], [], []>} : vector<8x8xf32>, vector<8x8xf32>, vector<8x8xf32> -> vector<8x8xf32>
    %c0_12 = arith.constant 0 : index
    %c0_13 = arith.constant 0 : index
    %c0_14 = arith.constant 0 : index
    %23 = vector.load %arg5[%c0_12, %c0_13, %c0_14] : memref<1x8x32xf32, #tpu.memory_space<vmem>>, vector<1x8x8xf32>
    %24 = vector.shape_cast %23 : vector<1x8x8xf32> to vector<8x8xf32>
    %25 = vector.shape_cast %22 : vector<8x8xf32> to vector<1x8x8xf32>
    tpu.vector_store %arg5[%c0_12, %c0_13, %c0_14], %25 {strides = array<i32>} : memref<1x8x32xf32, #tpu.memory_space<vmem>>, vector<1x8x8xf32>,
    %26 = vector.extract_strided_slice %1 {offsets = [0, 8], sizes = [8, 8], strides = [1, 1]} : vector<8x32xf32> to vector<8x8xf32>
    %cst_15 = arith.constant 0.353553385 : f32
    %27 = vector.broadcast %cst_15 : f32 to vector<8x8xf32>
    %28 = arith.mulf %26, %27 : vector<8x8xf32>
    %29 = vector.extract_strided_slice %3 {offsets = [0, 8], sizes = [8, 8], strides = [1, 1]} : vector<8x32xf32> to vector<8x8xf32>
    %cst_16 = arith.constant dense<0.000000e+00> : vector<8x8xf32>
    %30 = tpu.matmul %28, %29, %cst_16 {dimension_numbers = #tpu.dot_dimension_numbers<[1], [1], [0], [0], [0, 0, 1, 0], [], []>} : vector<8x8xf32>, vector<8x8xf32>, vector<8x8xf32> -> vector<8x8xf32>
    %cst_17 = arith.constant dense<0xFF800000> : vector<8xf32>
    %31 = vector.multi_reduction <maximumf>, %30, %cst_17 [1] : vector<8x8xf32> to vector<8xf32>
    %32 = vector.shape_cast %31 : vector<8xf32> to vector<8x1xf32>
    %33 = vector.broadcast %32 : vector<8x1xf32> to vector<8x8xf32>
    %34 = arith.subf %30, %33 : vector<8x8xf32>
    %35 = math.exp %34 : vector<8x8xf32>
    %cst_18 = arith.constant dense<0.000000e+00> : vector<8xf32>
    %36 = vector.multi_reduction <add>, %35, %cst_18 [1] : vector<8x8xf32> to vector<8xf32>
    %37 = vector.shape_cast %36 : vector<8xf32> to vector<8x1xf32>
    %38 = tpu.reciprocal %37 : vector<8x1xf32> -> vector<8x1xf32>
    %39 = vector.broadcast %38 : vector<8x1xf32> to vector<8x8xf32>
    %40 = arith.mulf %35, %39 : vector<8x8xf32>
    %41 = vector.extract_strided_slice %5 {offsets = [0, 8], sizes = [8, 8], strides = [1, 1]} : vector<8x32xf32> to vector<8x8xf32>
    %cst_19 = arith.constant dense<0.000000e+00> : vector<8x8xf32>
    %42 = tpu.matmul %40, %41, %cst_19 {dimension_numbers = #tpu.dot_dimension_numbers<[1], [0], [0], [1], [0, 0, 1, 1], [], []>} : vector<8x8xf32>, vector<8x8xf32>, vector<8x8xf32> -> vector<8x8xf32>
    %c0_20 = arith.constant 0 : index
    %c0_21 = arith.constant 0 : index
    %c8 = arith.constant 8 : index
    %43 = vector.load %arg5[%c0_20, %c0_21, %c8] : memref<1x8x32xf32, #tpu.memory_space<vmem>>, vector<1x8x8xf32>
    %44 = vector.shape_cast %43 : vector<1x8x8xf32> to vector<8x8xf32>
    %45 = vector.shape_cast %42 : vector<8x8xf32> to vector<1x8x8xf32>
    tpu.vector_store %arg5[%c0_20, %c0_21, %c8], %45 {strides = array<i32>} : memref<1x8x32xf32, #tpu.memory_space<vmem>>, vector<1x8x8xf32>,
    %46 = vector.extract_strided_slice %1 {offsets = [0, 16], sizes = [8, 8], strides = [1, 1]} : vector<8x32xf32> to vector<8x8xf32>
    %cst_22 = arith.constant 0.353553385 : f32
    %47 = vector.broadcast %cst_22 : f32 to vector<8x8xf32>
    %48 = arith.mulf %46, %47 : vector<8x8xf32>
    %49 = vector.extract_strided_slice %3 {offsets = [0, 16], sizes = [8, 8], strides = [1, 1]} : vector<8x32xf32> to vector<8x8xf32>
    %cst_23 = arith.constant dense<0.000000e+00> : vector<8x8xf32>
    %50 = tpu.matmul %48, %49, %cst_23 {dimension_numbers = #tpu.dot_dimension_numbers<[1], [1], [0], [0], [0, 0, 1, 0], [], []>} : vector<8x8xf32>, vector<8x8xf32>, vector<8x8xf32> -> vector<8x8xf32>
    %cst_24 = arith.constant dense<0xFF800000> : vector<8xf32>
    %51 = vector.multi_reduction <maximumf>, %50, %cst_24 [1] : vector<8x8xf32> to vector<8xf32>
    %52 = vector.shape_cast %51 : vector<8xf32> to vector<8x1xf32>
    %53 = vector.broadcast %52 : vector<8x1xf32> to vector<8x8xf32>
    %54 = arith.subf %50, %53 : vector<8x8xf32>
    %55 = math.exp %54 : vector<8x8xf32>
    %cst_25 = arith.constant dense<0.000000e+00> : vector<8xf32>
    %56 = vector.multi_reduction <add>, %55, %cst_25 [1] : vector<8x8xf32> to vector<8xf32>
    %57 = vector.shape_cast %56 : vector<8xf32> to vector<8x1xf32>
    %58 = tpu.reciprocal %57 : vector<8x1xf32> -> vector<8x1xf32>
    %59 = vector.broadcast %58 : vector<8x1xf32> to vector<8x8xf32>
    %60 = arith.mulf %55, %59 : vector<8x8xf32>
    %61 = vector.extract_strided_slice %5 {offsets = [0, 16], sizes = [8, 8], strides = [1, 1]} : vector<8x32xf32> to vector<8x8xf32>
    %cst_26 = arith.constant dense<0.000000e+00> : vector<8x8xf32>
    %62 = tpu.matmul %60, %61, %cst_26 {dimension_numbers = #tpu.dot_dimension_numbers<[1], [0], [0], [1], [0, 0, 1, 1], [], []>} : vector<8x8xf32>, vector<8x8xf32>, vector<8x8xf32> -> vector<8x8xf32>
    %c0_27 = arith.constant 0 : index
    %c0_28 = arith.constant 0 : index
    %c16 = arith.constant 16 : index
    %63 = vector.load %arg5[%c0_27, %c0_28, %c16] : memref<1x8x32xf32, #tpu.memory_space<vmem>>, vector<1x8x8xf32>
    %64 = vector.shape_cast %63 : vector<1x8x8xf32> to vector<8x8xf32>
    %65 = vector.shape_cast %62 : vector<8x8xf32> to vector<1x8x8xf32>
    tpu.vector_store %arg5[%c0_27, %c0_28, %c16], %65 {strides = array<i32>} : memref<1x8x32xf32, #tpu.memory_space<vmem>>, vector<1x8x8xf32>,
    %66 = vector.extract_strided_slice %1 {offsets = [0, 24], sizes = [8, 8], strides = [1, 1]} : vector<8x32xf32> to vector<8x8xf32>
    %cst_29 = arith.constant 0.353553385 : f32
    %67 = vector.broadcast %cst_29 : f32 to vector<8x8xf32>
    %68 = arith.mulf %66, %67 : vector<8x8xf32>
    %69 = vector.extract_strided_slice %3 {offsets = [0, 24], sizes = [8, 8], strides = [1, 1]} : vector<8x32xf32> to vector<8x8xf32>
    %cst_30 = arith.constant dense<0.000000e+00> : vector<8x8xf32>
    %70 = tpu.matmul %68, %69, %cst_30 {dimension_numbers = #tpu.dot_dimension_numbers<[1], [1], [0], [0], [0, 0, 1, 0], [], []>} : vector<8x8xf32>, vector<8x8xf32>, vector<8x8xf32> -> vector<8x8xf32>
    %cst_31 = arith.constant dense<0xFF800000> : vector<8xf32>
    %71 = vector.multi_reduction <maximumf>, %70, %cst_31 [1] : vector<8x8xf32> to vector<8xf32>
    %72 = vector.shape_cast %71 : vector<8xf32> to vector<8x1xf32>
    %73 = vector.broadcast %72 : vector<8x1xf32> to vector<8x8xf32>
    %74 = arith.subf %70, %73 : vector<8x8xf32>
    %75 = math.exp %74 : vector<8x8xf32>
    %cst_32 = arith.constant dense<0.000000e+00> : vector<8xf32>
    %76 = vector.multi_reduction <add>, %75, %cst_32 [1] : vector<8x8xf32> to vector<8xf32>
    %77 = vector.shape_cast %76 : vector<8xf32> to vector<8x1xf32>
    %78 = tpu.reciprocal %77 : vector<8x1xf32> -> vector<8x1xf32>
    %79 = vector.broadcast %78 : vector<8x1xf32> to vector<8x8xf32>
    %80 = arith.mulf %75, %79 : vector<8x8xf32>
    %81 = vector.extract_strided_slice %5 {offsets = [0, 24], sizes = [8, 8], strides = [1, 1]} : vector<8x32xf32> to vector<8x8xf32>
    %cst_33 = arith.constant dense<0.000000e+00> : vector<8x8xf32>
    %82 = tpu.matmul %80, %81, %cst_33 {dimension_numbers = #tpu.dot_dimension_numbers<[1], [0], [0], [1], [0, 0, 1, 1], [], []>} : vector<8x8xf32>, vector<8x8xf32>, vector<8x8xf32> -> vector<8x8xf32>
    %c0_34 = arith.constant 0 : index
    %c0_35 = arith.constant 0 : index
    %c24 = arith.constant 24 : index
    %83 = vector.load %arg5[%c0_34, %c0_35, %c24] : memref<1x8x32xf32, #tpu.memory_space<vmem>>, vector<1x8x8xf32>
    %84 = vector.shape_cast %83 : vector<1x8x8xf32> to vector<8x8xf32>
    %85 = vector.shape_cast %82 : vector<8x8xf32> to vector<1x8x8xf32>
    tpu.vector_store %arg5[%c0_34, %c0_35, %c24], %85 {strides = array<i32>} : memref<1x8x32xf32, #tpu.memory_space<vmem>>, vector<1x8x8xf32>,
    return
  }
  func.func @transform_0(%arg0: i32, %arg1: i32) -> (i32, i32, i32) {
    %c0_i32 = arith.constant 0 : i32
    %c0_i32_0 = arith.constant 0 : i32
    return %arg0, %arg1, %c0_i32 : i32, i32, i32
  }
  func.func @transform_1(%arg0: i32, %arg1: i32) -> (i32, i32, i32) {
    %c0_i32 = arith.constant 0 : i32
    %c0_i32_0 = arith.constant 0 : i32
    %c0_i32_1 = arith.constant 0 : i32
    return %arg0, %c0_i32, %c0_i32_0 : i32, i32, i32
  }
  func.func @transform_2(%arg0: i32, %arg1: i32) -> (i32, i32, i32) {
    %c0_i32 = arith.constant 0 : i32
    %c0_i32_0 = arith.constant 0 : i32
    %c0_i32_1 = arith.constant 0 : i32
    return %arg0, %c0_i32, %c0_i32_0 : i32, i32, i32
  }
  func.func @transform_3(%arg0: i32, %arg1: i32) -> (i32, i32, i32) {
    %c0_i32 = arith.constant 0 : i32
    %c0_i32_0 = arith.constant 0 : i32
    return %arg0, %arg1, %c0_i32 : i32, i32, i32
  }
}

</mosaic_0001>

<llo_original>
// kernel: tpu_custom_call.1
$region0: #{tpu_custom_call.1}
  #allocation0 [shape = 'u32[]', space=smem, size = 0x4, offset = 0x4, fixed_abs, tag = 'smem constant byte address 0x4 - core index']
  #allocation1 [shape = 'u32[72,128]{1,0:T(1,128)}', space=vmem, size = 0x9000, scoped, tag = 'internal scratch']
  %s0 = inlined_call_operand.hbm [shape: f32[8,128], index: 0, kind: input, shape index: {}]
  %s1 = inlined_call_operand.hbm [shape: f32[16,128], index: 1, kind: output, shape index: {}]
  %s2 = sld [smem:[#allocation0]]
  $region41: #{tpu_custom_call.1} parent=0
    _
  %s4 = ssub.s32 1, %s2
  %s5 = scalar_select 0, %s4, %s2
  $region1: #{tpu_custom_call.1} parent=0
    #allocation2 [shape = 'u8[4096]{0}', space=vmem, size = 0x1000, scoped, tag = 'input window, operand 0, single buffered']
    #allocation3 [shape = 's32[2]{0}', space=sflag, size = 0x8, scoped, tag = 'scoped memory for tpu_custom_call.1']
    #allocation4 [shape = 's32[2]{0}', space=sflag, size = 0x8, scoped, tag = 'scoped memory for tpu_custom_call.1']
    #allocation5 [shape = 'u8[8192]{0}', space=vmem, size = 0x2000, scoped, tag = 'output window, operand 0']
    %6 = vsyncpa [#allocation3], 0
    %7 = vsyncpa [#allocation4], 0
    %s8 = scalar_lea.sflag [#allocation4], 1
    %9 = vsyncpa %s8, 0
    loop: start=0, step=1, limit=4
    $region2: #{tpu_custom_call.1} parent=1 // loop_pre_header
      _
    $region3: #{tpu_custom_call.1} parent=1 // loop_header
      %s11 = sphi 0, %s15
      %p12 = scmp.ge.s32.totalorder %s11, 4
      %s19 = sphi 0, %s19
      %s21 = sphi 0, %s19
      %s22 = sphi 0, %s21
      %s36 = sphi 0, %s22
      %s42 = sphi 0, %s44
      %s45 = sphi 0, %s42
      %s46 = sphi 0, %s45
      %s62 = sphi 0, %s46
    $region4: #{tpu_custom_call.1} parent=1 // loop_header_branch
      %14 = sbr.rel (%p12) target = $region8
    $region5: #{tpu_custom_call.1} parent=1 // loop_body
      %s16 = ssub.s32 %s11, 1
      %s17 = ssub.s32 %s11, 2
      %s18 = sadd.s32 %s11, 1
      %s20 = sadd.s32 %s19, 1
      %p23 = scmp.eq.s32.totalorder %s11, 1
      %p24 = scmp.ne.s32.totalorder %s19, %s21
      %p25 = scmp.eq.s32.totalorder %s11, 0
      %p26 = por %p24, %p25
      %p27 = scmp.ne.s32.totalorder %s19, %s21
      %p28 = scmp.eq.s32.totalorder %s16, 1
      %p29 = por %p27, %p28
      %p30 = scmp.ne.s32.totalorder %s21, %s22
      %p31 = scmp.eq.s32.totalorder %s16, 0
      %p32 = por %p30, %p31
      %p33 = scmp.ne.s32.totalorder %s21, %s22
      %p34 = scmp.eq.s32.totalorder %s17, 1
      %p35 = por %p33, %p34
      %p37 = scmp.ne.s32.totalorder %s22, %s36
      %p38 = scmp.eq.s32.totalorder %s17, 0
      %p39 = por %p37, %p38
      %s40 = ssub.s32 %s11, %s18
      %p41 = scmp.eq.s32.totalorder %s40, 0
      %s43 = sadd.s32 %s42, 1
      %s44 = scalar_select %p41, %s42, %s43
      %p47 = pneg %p41
      %p48 = scmp.eq.s32.totalorder %s11, 1
      %p49 = por %p47, %p48
      %p50 = scmp.ne.s32.totalorder %s42, %s45
      %p51 = scmp.eq.s32.totalorder %s11, 0
      %p52 = por %p50, %p51
      %p53 = scmp.ne.s32.totalorder %s42, %s45
      %p54 = scmp.eq.s32.totalorder %s16, 1
      %p55 = por %p53, %p54
      %p56 = scmp.ne.s32.totalorder %s45, %s46
      %p57 = scmp.eq.s32.totalorder %s16, 0
      %p58 = por %p56, %p57
      %p59 = scmp.ne.s32.totalorder %s45, %s46
      %p60 = scmp.eq.s32.totalorder %s17, 1
      %p61 = por %p59, %p60
      %p63 = scmp.ne.s32.totalorder %s46, %s62
      %p64 = scmp.eq.s32.totalorder %s17, 0
      %p65 = por %p63, %p64
      %p66 = scmp.le.s32.totalorder 1, %s11
      %p67 = scmp.lt.s32.totalorder %s11, 3
      %p68 = pnand %p66, %p67
      %p69 = pneg %p68
      // Predicated region
      $region9: #{tpu_custom_call.1} parent=5 // pred_check
        _
      $region10: #{tpu_custom_call.1} parent=5 // pred_check_branch
        %71 = sbr.rel (%p68) target = $region12
      $region11: #{tpu_custom_call.1} parent=5 // pred_region
        %s72 = ssub.s32 %s11, 1
        // Predicated region
        $region13: #{tpu_custom_call.1} parent=11 // pred_check
          %p73 = pneg %p32
        $region14: #{tpu_custom_call.1} parent=11 // pred_check_branch
          %75 = sbr.rel (%p73) target = $region16
        $region15: #{tpu_custom_call.1} parent=11 // pred_region
          %77 = vsyncadd [#allocation3], 0
          %s79 = sshll.u32 %s0, 4
          %s80 = int_to_ptr.hbm [resolvable:$true] %s79
          %s81 = sshll.u32 [#allocation2], 4
          %s82 = int_to_ptr.vmem [resolvable:$true] %s81
          %84 = dma.hbm_to_vmem [thread:$0]  %s80, 128, %s82, [#allocation3]
        $region16: #{tpu_custom_call.1} parent=11 // pred_fallthru
          _
      $region12: #{tpu_custom_call.1} parent=5 // pred_fallthru
        _
      %p85 = scmp.lt.s32.totalorder %s11, 2
      // Predicated region
      $region17: #{tpu_custom_call.1} parent=5 // pred_check
        %p86 = pneg %p85
      $region18: #{tpu_custom_call.1} parent=5 // pred_check_branch
        %88 = sbr.rel (%p86) target = $region20
      $region19: #{tpu_custom_call.1} parent=5 // pred_region
        _
      $region20: #{tpu_custom_call.1} parent=5 // pred_fallthru
        _
      %p89 = scmp.le.s32.totalorder 1, %s11
      %p90 = scmp.lt.s32.totalorder %s11, 3
      %p91 = pnand %p89, %p90
      %p92 = pneg %p91
      // Predicated region
      $region21: #{tpu_custom_call.1} parent=5 // pred_check
        _
      $region22: #{tpu_custom_call.1} parent=5 // pred_check_branch
        %94 = sbr.rel (%p91) target = $region24
      $region23: #{tpu_custom_call.1} parent=5 // pred_region
        %s95 = ssub.s32 %s11, 1
        // Predicated region
        $region25: #{tpu_custom_call.1} parent=23 // pred_check
          %p96 = pneg %p32
        $region26: #{tpu_custom_call.1} parent=23 // pred_check_branch
          %98 = sbr.rel (%p96) target = $region28
        $region27: #{tpu_custom_call.1} parent=23 // pred_region
          %100 = dma.done [#allocation3], 128
        $region28: #{tpu_custom_call.1} parent=23 // pred_fallthru
          _
        %p101 = pneg %p32
        %p102 = pneg %p29
        %p103 = pneg %p58
        %p104 = pneg %p55
        %s105 = sand.u32 %s45, 1
        %s106 = scalar_lea.sflag [#allocation4], %s105
        %s107 = sand.u32 %s45, 1
        %s108 = smul.addr %s107, 8
        %s109 = scalar_lea.vmem [#allocation5], %s108
        %v110 = vld [vmem:[#allocation2] sm:$0xff]
        %111 = vst [vmem:[%s109] sm:$0xff] %v110
        %s112 = sand.u32 %s45, 1
        %s113 = scalar_lea.sflag [#allocation4], %s112
        %s114 = sand.u32 %s45, 1
        %s115 = smul.addr %s114, 8
        %s116 = scalar_lea.vmem [#allocation5], %s115
        // Predicated region
        $region29: #{tpu_custom_call.1} parent=23 // pred_check
          %p117 = pneg %p55
        $region30: #{tpu_custom_call.1} parent=23 // pred_check_branch
          %119 = sbr.rel (%p117) target = $region32
        $region31: #{tpu_custom_call.1} parent=23 // pred_region
          %121 = vsyncadd %s113, 0
          %s122 = smul.addr %s16, 8
          %s123 = scalar_lea.hbm %s1, %s122
          %s125 = sshll.u32 %s116, 4
          %s126 = int_to_ptr.vmem [resolvable:$true] %s125
          %s127 = sshll.u32 %s123, 4
          %s128 = int_to_ptr.hbm [resolvable:$true] %s127
          %130 = dma.vmem_to_hbm [thread:$0]  %s126, 128, %s128, %s113
        $region32: #{tpu_custom_call.1} parent=23 // pred_fallthru
          _
      $region24: #{tpu_custom_call.1} parent=5 // pred_fallthru
        _
      %p131 = scmp.le.s32.totalorder 2, %s11
      // Predicated region
      $region33: #{tpu_custom_call.1} parent=5 // pred_check
        %p132 = pneg %p131
      $region34: #{tpu_custom_call.1} parent=5 // pred_check_branch
        %134 = sbr.rel (%p132) target = $region36
      $region35: #{tpu_custom_call.1} parent=5 // pred_region
        %s135 = ssub.s32 %s11, 2
        // Predicated region
        $region37: #{tpu_custom_call.1} parent=35 // pred_check
          %p136 = pneg %p61
        $region38: #{tpu_custom_call.1} parent=35 // pred_check_branch
          %138 = sbr.rel (%p136) target = $region40
        $region39: #{tpu_custom_call.1} parent=35 // pred_region
          %s139 = sand.u32 %s46, 1
          %s140 = scalar_lea.sflag [#allocation4], %s139
          %s141 = sand.u32 %s46, 1
          %s142 = smul.addr %s141, 8
          %s143 = scalar_lea.vmem [#allocation5], %s142
          %145 = dma.done %s140, 128
        $region40: #{tpu_custom_call.1} parent=35 // pred_fallthru
          _
      $region36: #{tpu_custom_call.1} parent=5 // pred_fallthru
        _
    $region6: #{tpu_custom_call.1} parent=1 // loop_footer
      %s15 = sadd.s32 1, %s11
    $region7: #{tpu_custom_call.1} parent=1 // loop_footer_branch
      %10 = sbr.rel target = $region3
    $region8: #{tpu_custom_call.1} parent=1 // loop_exit
      _
    %146 = vsyncpa [#allocation3], 1
    %s147 = scalar_lea.sflag [#allocation3], 1
    %148 = vsyncpa %s147, 1
    %149 = vsyncpa [#allocation4], 1
    %s150 = scalar_lea.sflag [#allocation4], 1
    %151 = vsyncpa %s150, 1

// kernel: encoder_layer_forward.4
$region0: #{encoder_layer_forward.4}
  #allocation0 [shape = 'u32[]', space=smem, size = 0x4, offset = 0x4, fixed_abs, tag = 'smem constant byte address 0x4 - core index']
  #allocation1 [shape = 'u32[72,128]{1,0:T(1,128)}', space=vmem, size = 0x9000, scoped, tag = 'internal scratch']
  %s0 = inlined_call_operand.hbm [shape: f32[16,32], index: 0, kind: input, shape index: {}]
  %s1 = inlined_call_operand.hbm [shape: f32[32,96], index: 1, kind: input, shape index: {}]
  %s2 = inlined_call_operand.vmem [shape: f32[1,96], index: 2, kind: input, shape index: {}]
  %s3 = inlined_call_operand.vmem [shape: f32[16,32], index: 3, kind: output, shape index: {0}]
  %s4 = inlined_call_operand.vmem [shape: f32[16,32], index: 4, kind: output, shape index: {1}]
  %s5 = inlined_call_operand.vmem [shape: f32[16,32], index: 5, kind: output, shape index: {2}]
  %6 = xla_tuple %s3, %s4, %s5
  %s7 = sld [smem:[#allocation0]]
  $region46: #{encoder_layer_forward.4} parent=0
    _
  %s9 = ssub.s32 1, %s7
  %s10 = scalar_select 0, %s9, %s7
  $region1: #{encoder_layer_forward.4} parent=0
    #allocation2 [shape = 'u8[8192]{0}', space=vmem, size = 0x2000, scoped, tag = 'input window, operand 0, single buffered']
    #allocation3 [shape = 's32[1]{0}', space=sflag, size = 0x4, scoped, tag = 'scoped memory for encoder_layer_forward.4']
    #allocation4 [shape = 'u8[16384]{0}', space=vmem, size = 0x4000, scoped, tag = 'input window, operand 1, single buffered']
    #allocation5 [shape = 's32[1]{0}', space=sflag, size = 0x4, scoped, tag = 'scoped memory for encoder_layer_forward.4']
    %11 = vsyncpa [#allocation3], 0
    %12 = vsyncpa [#allocation5], 0
    // Predicated region
    $region2: #{encoder_layer_forward.4} parent=1 // pred_check
      _
    $region3: #{encoder_layer_forward.4} parent=1 // pred_check_branch
      %14 = sbr.rel (0) target = $region5
    $region4: #{encoder_layer_forward.4} parent=1 // pred_region
      %16 = vsyncadd [#allocation3], 0
      %s17 = sshll.u32 %s0, 4
      %s18 = int_to_ptr.hbm [resolvable:$true] %s17
      %s19 = sshll.u32 [#allocation2], 4
      %s20 = int_to_ptr.vmem [resolvable:$true] %s19
      %25 = dma.hbm_to_vmem [thread:$0]  %s18, 256, %s20, [#allocation3], 128, 128, 8
    $region5: #{encoder_layer_forward.4} parent=1 // pred_fallthru
      _
    // Predicated region
    $region6: #{encoder_layer_forward.4} parent=1 // pred_check
      _
    $region7: #{encoder_layer_forward.4} parent=1 // pred_check_branch
      %27 = sbr.rel (0) target = $region9
    $region8: #{encoder_layer_forward.4} parent=1 // pred_region
      %29 = vsyncadd [#allocation5], 0
      %s30 = sshll.u32 %s1, 4
      %s31 = int_to_ptr.hbm [resolvable:$true] %s30
      %s32 = sshll.u32 [#allocation4], 4
      %s33 = int_to_ptr.vmem [resolvable:$true] %s32
      %38 = dma.hbm_to_vmem [thread:$0]  %s31, 512, %s33, [#allocation5], 128, 128, 8
    $region9: #{encoder_layer_forward.4} parent=1 // pred_fallthru
      _
    // Predicated region
    $region10: #{encoder_layer_forward.4} parent=1 // pred_check
      _
    $region11: #{encoder_layer_forward.4} parent=1 // pred_check_branch
      %40 = sbr.rel (0) target = $region13
    $region12: #{encoder_layer_forward.4} parent=1 // pred_region
      _
    $region13: #{encoder_layer_forward.4} parent=1 // pred_fallthru
      _
    // Predicated region
    $region14: #{encoder_layer_forward.4} parent=1 // pred_check
      _
    $region15: #{encoder_layer_forward.4} parent=1 // pred_check_branch
      %42 = sbr.rel (0) target = $region17
    $region16: #{encoder_layer_forward.4} parent=1 // pred_region
      %44 = dma.done [#allocation3], 256
    $region17: #{encoder_layer_forward.4} parent=1 // pred_fallthru
      _
    // Predicated region
    $region18: #{encoder_layer_forward.4} parent=1 // pred_check
      _
    $region19: #{encoder_layer_forward.4} parent=1 // pred_check_branch
      %46 = sbr.rel (0) target = $region21
    $region20: #{encoder_layer_forward.4} parent=1 // pred_region
      %48 = dma.done [#allocation5], 512
    $region21: #{encoder_layer_forward.4} parent=1 // pred_fallthru
      _
    %v49 = vld [vmem:[#allocation2] sm:$0xff]
    %v50 = vld [vmem:[#allocation2 + $0x8] sm:$0xff]
    %v51 = vld [vmem:[#allocation4] sm:$0xff]
    %v52 = vld [vmem:[#allocation4 + $0x8] sm:$0xff]
    %v53 = vld [vmem:[#allocation4 + $0x10] sm:$0xff]
    %v54 = vld [vmem:[#allocation4 + $0x18] sm:$0xff]
    %v55 = vld [vmem:[%s2] sm:$0x1]
    %v57 = vperm.slane %v55, 0
    %vm59 = vcmask 261120
    %v61 = vsel %vm59, %v49, 0
    %v64 = vsel %vm59, %v50, 0
    %66 = vmatpush.msra.mxu0 0.0
    %67 = vmatpush.msra.mxu0 0.0
    %68 = vmatpush.msra.mxu0 0.0
    %69 = vmatpush.msra.mxu0 0.0
    %70 = vmatpush.msra.mxu0 0.0
    %71 = vmatpush.msra.mxu0 0.0
    %72 = vmatpush.msra.mxu0 0.0
    %73 = vmatpush.msra.mxu0 0.0
    %74 = vmatpush.msra.mxu0 0.0
    %75 = vmatpush.msra.mxu0 0.0
    %76 = vmatpush.msra.mxu0 0.0
    %77 = vmatpush.msra.mxu0 0.0
    %78 = vmatpush.msra.mxu0 %v54
    %79 = vmatpush.msra.mxu0 %v53
    %80 = vmatpush.msra.mxu0 %v52
    %81 = vmatpush.msra.mxu0 %v51
    %82 = vmatmul.f32.gmra.mxu0 %v61
    %v83 = vpop.f32.mrf.mxu0
    %v84 = vadd.f32 %v57, %v83
    %85 = vmatmul.f32.gmra.mxu0 %v64
    %v86 = vpop.f32.mrf.mxu0
    %v87 = vadd.f32 %v57, %v86
    %88 = vdwg.mxu0
    %89 = vst.msk [vmem:[%s3] sm:$0xff] %vm59, %v84
    %90 = vst.msk [vmem:[%s3 + $0x8] sm:$0xff] %vm59, %v87
    %93 = vrot.lane.b32.xlu0 %v84, 96
    %v94 = vpop.permute.xlu0 %93
    %95 = vrot.lane.b32.xlu0 %v87, 96
    %v96 = vpop.permute.xlu0 %95
    %99 = vst.msk [vmem:[%s4] sm:$0xff] %vm59, %v94
    %100 = vst.msk [vmem:[%s4 + $0x8] sm:$0xff] %vm59, %v96
    %101 = vrot.lane.b32.xlu0 %v84, 64
    %v102 = vpop.permute.xlu0 %101
    %103 = vrot.lane.b32.xlu0 %v87, 64
    %v104 = vpop.permute.xlu0 %103
    %107 = vst.msk [vmem:[%s5] sm:$0xff] %vm59, %v102
    %108 = vst.msk [vmem:[%s5 + $0x8] sm:$0xff] %vm59, %v104
    // Predicated region
    $region22: #{encoder_layer_forward.4} parent=1 // pred_check
      _
    $region23: #{encoder_layer_forward.4} parent=1 // pred_check_branch
      %110 = sbr.rel (0) target = $region25
    $region24: #{encoder_layer_forward.4} parent=1 // pred_region
      _
    $region25: #{encoder_layer_forward.4} parent=1 // pred_fallthru
      _
    // Predicated region
    $region26: #{encoder_layer_forward.4} parent=1 // pred_check
      _
    $region27: #{encoder_layer_forward.4} parent=1 // pred_check_branch
      %112 = sbr.rel (0) target = $region29
    $region28: #{encoder_layer_forward.4} parent=1 // pred_region
      _
    $region29: #{encoder_layer_forward.4} parent=1 // pred_fallthru
      _
    // Predicated region
    $region30: #{encoder_layer_forward.4} parent=1 // pred_check
      _
    $region31: #{encoder_layer_forward.4} parent=1 // pred_check_branch
      %114 = sbr.rel (0) target = $region33
    $region32: #{encoder_layer_forward.4} parent=1 // pred_region
      _
    $region33: #{encoder_layer_forward.4} parent=1 // pred_fallthru
      _
    // Predicated region
    $region34: #{encoder_layer_forward.4} parent=1 // pred_check
      _
    $region35: #{encoder_layer_forward.4} parent=1 // pred_check_branch
      %116 = sbr.rel (0) target = $region37
    $region36: #{encoder_layer_forward.4} parent=1 // pred_region
      _
    $region37: #{encoder_layer_forward.4} parent=1 // pred_fallthru
      _
    // Predicated region
    $region38: #{encoder_layer_forward.4} parent=1 // pred_check
      _
    $region39: #{encoder_layer_forward.4} parent=1 // pred_check_branch
      %118 = sbr.rel (0) target = $region41
    $region40: #{encoder_layer_forward.4} parent=1 // pred_region
      _
    $region41: #{encoder_layer_forward.4} parent=1 // pred_fallthru
      _
    // Predicated region
    $region42: #{encoder_layer_forward.4} parent=1 // pred_check
      _
    $region43: #{encoder_layer_forward.4} parent=1 // pred_check_branch
      %120 = sbr.rel (0) target = $region45
    $region44: #{encoder_layer_forward.4} parent=1 // pred_region
      _
    $region45: #{encoder_layer_forward.4} parent=1 // pred_fallthru
      _
    %121 = vsyncpa [#allocation3], 1
    %122 = vsyncpa [#allocation5], 1

// kernel: encoder_layer_forward.7
$region0: #{encoder_layer_forward.7}
  #allocation0 [shape = 'u32[]', space=smem, size = 0x4, offset = 0x4, fixed_abs, tag = 'smem constant byte address 0x4 - core index']
  #allocation1 [shape = 'u32[72,128]{1,0:T(1,128)}', space=vmem, size = 0x9000, scoped, tag = 'internal scratch']
  #allocation2 [shape = 'f32[16,32]{1,0:T(8,128)}', space=vmem, size = 0x2000, scoped, tag = 'scratch operand']
  %s0 = inlined_call_operand.vmem [shape: f32[16,32], index: 0, kind: input, shape index: {}]
  %s1 = inlined_call_operand.vmem [shape: f32[32,64], index: 1, kind: input, shape index: {}]
  %s2 = inlined_call_operand.vmem [shape: f32[1,64], index: 2, kind: input, shape index: {}]
  %s3 = inlined_call_operand.vmem [shape: f32[64,32], index: 3, kind: input, shape index: {}]
  %s4 = inlined_call_operand.vmem [shape: f32[1,32], index: 4, kind: input, shape index: {}]
  %s5 = inlined_call_operand.vmem [shape: f32[1,32], index: 5, kind: input, shape index: {}]
  %s6 = inlined_call_operand.vmem [shape: f32[1,32], index: 6, kind: input, shape index: {}]
  %s7 = inlined_call_operand.hbm [shape: f32[16,32], index: 7, kind: output, shape index: {}]
  %s8 = sld [smem:[#allocation0]]
  $region46: #{encoder_layer_forward.7} parent=0
    _
  %s10 = ssub.s32 1, %s8
  %s11 = scalar_select 0, %s10, %s8
  $region1: #{encoder_layer_forward.7} parent=0
    #allocation3 [shape = 'u8[8192]{0}', space=vmem, size = 0x2000, scoped, tag = 'output window, operand 0, single buffered']
    #allocation4 [shape = 's32[1]{0}', space=sflag, size = 0x4, scoped, tag = 'scoped memory for encoder_layer_forward.7']
    %12 = vsyncpa [#allocation4], 0
    // Predicated region
    $region2: #{encoder_layer_forward.7} parent=1 // pred_check
      _
    $region3: #{encoder_layer_forward.7} parent=1 // pred_check_branch
      %14 = sbr.rel (0) target = $region5
    $region4: #{encoder_layer_forward.7} parent=1 // pred_region
      _
    $region5: #{encoder_layer_forward.7} parent=1 // pred_fallthru
      _
    // Predicated region
    $region6: #{encoder_layer_forward.7} parent=1 // pred_check
      _
    $region7: #{encoder_layer_forward.7} parent=1 // pred_check_branch
      %16 = sbr.rel (0) target = $region9
    $region8: #{encoder_layer_forward.7} parent=1 // pred_region
      _
    $region9: #{encoder_layer_forward.7} parent=1 // pred_fallthru
      _
    // Predicated region
    $region10: #{encoder_layer_forward.7} parent=1 // pred_check
      _
    $region11: #{encoder_layer_forward.7} parent=1 // pred_check_branch
      %18 = sbr.rel (0) target = $region13
    $region12: #{encoder_layer_forward.7} parent=1 // pred_region
      _
    $region13: #{encoder_layer_forward.7} parent=1 // pred_fallthru
      _
    // Predicated region
    $region14: #{encoder_layer_forward.7} parent=1 // pred_check
      _
    $region15: #{encoder_layer_forward.7} parent=1 // pred_check_branch
      %20 = sbr.rel (0) target = $region17
    $region16: #{encoder_layer_forward.7} parent=1 // pred_region
      _
    $region17: #{encoder_layer_forward.7} parent=1 // pred_fallthru
      _
    // Predicated region
    $region18: #{encoder_layer_forward.7} parent=1 // pred_check
      _
    $region19: #{encoder_layer_forward.7} parent=1 // pred_check_branch
      %22 = sbr.rel (0) target = $region21
    $region20: #{encoder_layer_forward.7} parent=1 // pred_region
      _
    $region21: #{encoder_layer_forward.7} parent=1 // pred_fallthru
      _
    // Predicated region
    $region22: #{encoder_layer_forward.7} parent=1 // pred_check
      _
    $region23: #{encoder_layer_forward.7} parent=1 // pred_check_branch
      %24 = sbr.rel (0) target = $region25
    $region24: #{encoder_layer_forward.7} parent=1 // pred_region
      _
    $region25: #{encoder_layer_forward.7} parent=1 // pred_fallthru
      _
    // Predicated region
    $region26: #{encoder_layer_forward.7} parent=1 // pred_check
      _
    $region27: #{encoder_layer_forward.7} parent=1 // pred_check_branch
      %26 = sbr.rel (0) target = $region29
    $region28: #{encoder_layer_forward.7} parent=1 // pred_region
      _
    $region29: #{encoder_layer_forward.7} parent=1 // pred_fallthru
      _
    %p27 = scmp.eq.s32.totalorder 0, 0
    // Predicated region
    $region30: #{encoder_layer_forward.7} parent=1 // pred_check
      %p28 = pneg %p27
    $region31: #{encoder_layer_forward.7} parent=1 // pred_check_branch
      %30 = sbr.rel (%p28) target = $region33
    $region32: #{encoder_layer_forward.7} parent=1 // pred_region
      %vm31 = vcmask 261120
      %32 = vst.msk [vmem:[#allocation2] sm:$0xff] %vm31, 0.0
      %33 = vst.msk [vmem:[#allocation2 + $0x8] sm:$0xff] %vm31, 0.0
    $region33: #{encoder_layer_forward.7} parent=1 // pred_fallthru
      _
    %v34 = vld [vmem:[%s0] sm:$0xff]
    %v35 = vld [vmem:[%s0 + $0x8] sm:$0xff]
    %v36 = vld [vmem:[%s1] sm:$0xff]
    %v37 = vld [vmem:[%s1 + $0x8] sm:$0xff]
    %v38 = vld [vmem:[%s1 + $0x10] sm:$0xff]
    %v39 = vld [vmem:[%s1 + $0x18] sm:$0xff]
    %v40 = vld [vmem:[%s2] sm:$0x1]
    %v42 = vperm.slane %v40, 0
    %vm44 = vcmask 261120
    %v46 = vsel %vm44, %v34, 0
    %v49 = vsel %vm44, %v35, 0
    %51 = vmatpush.msra.mxu0 0.0
    %52 = vmatpush.msra.mxu0 0.0
    %53 = vmatpush.msra.mxu0 0.0
    %54 = vmatpush.msra.mxu0 0.0
    %55 = vmatpush.msra.mxu0 0.0
    %56 = vmatpush.msra.mxu0 0.0
    %57 = vmatpush.msra.mxu0 0.0
    %58 = vmatpush.msra.mxu0 0.0
    %59 = vmatpush.msra.mxu0 0.0
    %60 = vmatpush.msra.mxu0 0.0
    %61 = vmatpush.msra.mxu0 0.0
    %62 = vmatpush.msra.mxu0 0.0
    %63 = vmatpush.msra.mxu0 %v39
    %64 = vmatpush.msra.mxu0 %v38
    %65 = vmatpush.msra.mxu0 %v37
    %66 = vmatpush.msra.mxu0 %v36
    %67 = vmatmul.f32.gmra.mxu0 %v46
    %v68 = vpop.f32.mrf.mxu0
    %v69 = vadd.f32 %v42, %v68
    %70 = vmatmul.f32.gmra.mxu0 %v49
    %v71 = vpop.f32.mrf.mxu0
    %v72 = vadd.f32 %v42, %v71
    %73 = vdwg.mxu0
    %v74 = vmax.f32 %v69, 0.0
    %v75 = vmax.f32 %v72, 0.0
    %v76 = vld [vmem:[#allocation2] sm:$0xff]
    %v77 = vld [vmem:[#allocation2 + $0x8] sm:$0xff]
    %v78 = vld [vmem:[%s3] sm:$0xff]
    %v79 = vld [vmem:[%s3 + $0x8] sm:$0xff]
    %v80 = vld [vmem:[%s3 + $0x10] sm:$0xff]
    %v81 = vld [vmem:[%s3 + $0x18] sm:$0xff]
    %v82 = vld [vmem:[%s3 + $0x20] sm:$0xff]
    %v83 = vld [vmem:[%s3 + $0x28] sm:$0xff]
    %v84 = vld [vmem:[%s3 + $0x30] sm:$0xff]
    %v85 = vld [vmem:[%s3 + $0x38] sm:$0xff]
    %vm86 = vcmask 523264
    %v88 = vsel %vm86, %v74, 0
    %v91 = vsel %vm86, %v75, 0
    %93 = vmatpush.msra.mxu0 0.0
    %94 = vmatpush.msra.mxu0 0.0
    %95 = vmatpush.msra.mxu0 0.0
    %96 = vmatpush.msra.mxu0 0.0
    %97 = vmatpush.msra.mxu0 0.0
    %98 = vmatpush.msra.mxu0 0.0
    %99 = vmatpush.msra.mxu0 0.0
    %100 = vmatpush.msra.mxu0 0.0
    %101 = vmatpush.msra.mxu0 %v85
    %102 = vmatpush.msra.mxu0 %v84
    %103 = vmatpush.msra.mxu0 %v83
    %104 = vmatpush.msra.mxu0 %v82
    %105 = vmatpush.msra.mxu0 %v81
    %106 = vmatpush.msra.mxu0 %v80
    %107 = vmatpush.msra.mxu0 %v79
    %108 = vmatpush.msra.mxu0 %v78
    %109 = vmatmul.f32.gmra.mxu0 %v88
    %v110 = vpop.f32.mrf.mxu0
    %v111 = vadd.f32 0.0, %v110
    %112 = vmatmul.f32.gmra.mxu0 %v91
    %v113 = vpop.f32.mrf.mxu0
    %v114 = vadd.f32 0.0, %v113
    %115 = vdwg.mxu0
    %v116 = vadd.f32 %v76, %v111
    %v117 = vadd.f32 %v77, %v114
    %118 = vst.msk [vmem:[#allocation2] sm:$0xff] %vm44, %v116
    %119 = vst.msk [vmem:[#allocation2 + $0x8] sm:$0xff] %vm44, %v117
    // Predicated region
    $region34: #{encoder_layer_forward.7} parent=1 // pred_check
      %p120 = pneg %p27
    $region35: #{encoder_layer_forward.7} parent=1 // pred_check_branch
      %122 = sbr.rel (%p120) target = $region37
    $region36: #{encoder_layer_forward.7} parent=1 // pred_region
      %v123 = vld [vmem:[#allocation2] sm:$0xff]
      %v124 = vld [vmem:[#allocation2 + $0x8] sm:$0xff]
      %v125 = vadd.f32 %v34, %v123
      %v126 = vadd.f32 %v35, %v124
      %v127 = vld [vmem:[%s4] sm:$0x1]
      %v129 = vperm.slane %v127, 0
      %v131 = vadd.f32 %v125, %v129
      %v132 = vadd.f32 %v126, %v129
      %v133 = vsel %vm44, %v131, 0.0
      %134 = vadd.xlane.f32.xlu0 %v133
      %v135 = vpop.xlane.xlu0 %134
      %v136 = vsel %vm44, %v132, 0.0
      %137 = vadd.xlane.f32.xlu0 %v136
      %v138 = vpop.xlane.xlu0 %137
      %v139 = vrcp.pop 32.0
      %v140 = vmul.f32 32.0, %v139
      %v141 = vsub.f32 1.0, %v140
      %v142 = vmul.f32 %v139, %v141
      %v143 = vadd.f32 %v139, %v142
      %vm144 = vweird.f32 %v139
      %v145 = vsel %vm144, %v139, %v143
      %v146 = vmul.f32 %v135, %v145
      %v147 = vmul.f32 %v138, %v145
      %v148 = vsub.f32 %v131, %v146
      %v149 = vsub.f32 %v132, %v147
      %v150 = vmul.f32 %v148, %v148
      %v151 = vmul.f32 %v149, %v149
      %v152 = vsel %vm44, %v150, 0.0
      %153 = vadd.xlane.f32.xlu0 %v152
      %v154 = vpop.xlane.xlu0 %153
      %v155 = vsel %vm44, %v151, 0.0
      %156 = vadd.xlane.f32.xlu0 %v155
      %v157 = vpop.xlane.xlu0 %156
      %v158 = vmul.f32 %v154, %v145
      %v159 = vmul.f32 %v157, %v145
      %v160 = vadd.f32 %v158, 1e-05
      %v161 = vadd.f32 %v159, 1e-05
      %v162 = vrsqrt.pop %v160
      %v163 = vmul.f32 %v162, %v160
      %v164 = vmul.f32 %v163, %v162
      %v165 = vmul.f32 0.5, %v164
      %v166 = vsub.f32 1.5, %v165
      %v167 = vmul.f32 %v162, %v166
      %vm168 = vweird.f32 %v160
      %vm169 = vweird.f32 %v162
      %vm170 = vmor %vm168, %vm169
      %v171 = vsel %vm170, %v162, %v167
      %v172 = vrsqrt.pop %v161
      %v173 = vmul.f32 %v172, %v161
      %v174 = vmul.f32 %v173, %v172
      %v175 = vmul.f32 0.5, %v174
      %v176 = vsub.f32 1.5, %v175
      %v177 = vmul.f32 %v172, %v176
      %vm178 = vweird.f32 %v161
      %vm179 = vweird.f32 %v172
      %vm180 = vmor %vm178, %vm179
      %v181 = vsel %vm180, %v172, %v177
      %v182 = vmul.f32 %v148, %v171
      %v183 = vmul.f32 %v149, %v181
      %v184 = vld [vmem:[%s5] sm:$0x1]
      %v186 = vperm.slane %v184, 0
      %v188 = vmul.f32 %v182, %v186
      %v189 = vmul.f32 %v183, %v186
      %v190 = vld [vmem:[%s6] sm:$0x1]
      %v192 = vperm.slane %v190, 0
      %v194 = vadd.f32 %v188, %v192
      %v195 = vadd.f32 %v189, %v192
      %196 = vst.msk [vmem:[#allocation3] sm:$0xff] %vm44, %v194
      %197 = vst.msk [vmem:[#allocation3 + $0x8] sm:$0xff] %vm44, %v195
    $region37: #{encoder_layer_forward.7} parent=1 // pred_fallthru
      _
    // Predicated region
    $region38: #{encoder_layer_forward.7} parent=1 // pred_check
      _
    $region39: #{encoder_layer_forward.7} parent=1 // pred_check_branch
      %199 = sbr.rel (0) target = $region41
    $region40: #{encoder_layer_forward.7} parent=1 // pred_region
      %201 = vsyncadd [#allocation4], 0
      %s202 = sshll.u32 [#allocation3], 4
      %s203 = int_to_ptr.vmem [resolvable:$true] %s202
      %s204 = sshll.u32 %s7, 4
      %s205 = int_to_ptr.hbm [resolvable:$true] %s204
      %210 = dma.vmem_to_hbm [thread:$0]  %s203, 256, %s205, [#allocation4], 128, 128, 8
    $region41: #{encoder_layer_forward.7} parent=1 // pred_fallthru
      _
    // Predicated region
    $region42: #{encoder_layer_forward.7} parent=1 // pred_check
      _
    $region43: #{encoder_layer_forward.7} parent=1 // pred_check_branch
      %212 = sbr.rel (0) target = $region45
    $region44: #{encoder_layer_forward.7} parent=1 // pred_region
      %214 = dma.done [#allocation4], 256
    $region45: #{encoder_layer_forward.7} parent=1 // pred_fallthru
      _
    %215 = vsyncpa [#allocation4], 1

// kernel: encoder_layer_forward.6
$region0: #{encoder_layer_forward.6}
  #allocation0 [shape = 'u32[]', space=smem, size = 0x4, offset = 0x4, fixed_abs, tag = 'smem constant byte address 0x4 - core index']
  #allocation1 [shape = 'u32[72,128]{1,0:T(1,128)}', space=vmem, size = 0x9000, scoped, tag = 'internal scratch']
  %s0 = inlined_call_operand.vmem [shape: f32[16,32], index: 0, kind: input, shape index: {}]
  %s1 = inlined_call_operand.hbm [shape: f32[16,32], index: 1, kind: input, shape index: {}]
  %s2 = inlined_call_operand.hbm [shape: f32[32,32], index: 2, kind: input, shape index: {}]
  %s3 = inlined_call_operand.vmem [shape: f32[1,32], index: 3, kind: input, shape index: {}]
  %s4 = inlined_call_operand.vmem [shape: f32[1,32], index: 4, kind: input, shape index: {}]
  %s5 = inlined_call_operand.vmem [shape: f32[1,32], index: 5, kind: input, shape index: {}]
  %s6 = inlined_call_operand.vmem [shape: f32[16,32], index: 6, kind: output, shape index: {}]
  %s7 = sld [smem:[#allocation0]]
  $region42: #{encoder_layer_forward.6} parent=0
    _
  %s9 = ssub.s32 1, %s7
  %s10 = scalar_select 0, %s9, %s7
  $region1: #{encoder_layer_forward.6} parent=0
    #allocation2 [shape = 'u8[8192]{0}', space=vmem, size = 0x2000, scoped, tag = 'input window, operand 1, single buffered']
    #allocation3 [shape = 's32[1]{0}', space=sflag, size = 0x4, scoped, tag = 'scoped memory for encoder_layer_forward.6']
    #allocation4 [shape = 'u8[16384]{0}', space=vmem, size = 0x4000, scoped, tag = 'input window, operand 2, single buffered']
    #allocation5 [shape = 's32[1]{0}', space=sflag, size = 0x4, scoped, tag = 'scoped memory for encoder_layer_forward.6']
    %11 = vsyncpa [#allocation3], 0
    %12 = vsyncpa [#allocation5], 0
    // Predicated region
    $region2: #{encoder_layer_forward.6} parent=1 // pred_check
      _
    $region3: #{encoder_layer_forward.6} parent=1 // pred_check_branch
      %14 = sbr.rel (0) target = $region5
    $region4: #{encoder_layer_forward.6} parent=1 // pred_region
      _
    $region5: #{encoder_layer_forward.6} parent=1 // pred_fallthru
      _
    // Predicated region
    $region6: #{encoder_layer_forward.6} parent=1 // pred_check
      _
    $region7: #{encoder_layer_forward.6} parent=1 // pred_check_branch
      %16 = sbr.rel (0) target = $region9
    $region8: #{encoder_layer_forward.6} parent=1 // pred_region
      %18 = vsyncadd [#allocation3], 0
      %s19 = sshll.u32 %s1, 4
      %s20 = int_to_ptr.hbm [resolvable:$true] %s19
      %s21 = sshll.u32 [#allocation2], 4
      %s22 = int_to_ptr.vmem [resolvable:$true] %s21
      %27 = dma.hbm_to_vmem [thread:$0]  %s20, 256, %s22, [#allocation3], 128, 128, 8
    $region9: #{encoder_layer_forward.6} parent=1 // pred_fallthru
      _
    // Predicated region
    $region10: #{encoder_layer_forward.6} parent=1 // pred_check
      _
    $region11: #{encoder_layer_forward.6} parent=1 // pred_check_branch
      %29 = sbr.rel (0) target = $region13
    $region12: #{encoder_layer_forward.6} parent=1 // pred_region
      %31 = vsyncadd [#allocation5], 0
      %s32 = sshll.u32 %s2, 4
      %s33 = int_to_ptr.hbm [resolvable:$true] %s32
      %s34 = sshll.u32 [#allocation4], 4
      %s35 = int_to_ptr.vmem [resolvable:$true] %s34
      %40 = dma.hbm_to_vmem [thread:$0]  %s33, 512, %s35, [#allocation5], 128, 128, 8
    $region13: #{encoder_layer_forward.6} parent=1 // pred_fallthru
      _
    // Predicated region
    $region14: #{encoder_layer_forward.6} parent=1 // pred_check
      _
    $region15: #{encoder_layer_forward.6} parent=1 // pred_check_branch
      %42 = sbr.rel (0) target = $region17
    $region16: #{encoder_layer_forward.6} parent=1 // pred_region
      _
    $region17: #{encoder_layer_forward.6} parent=1 // pred_fallthru
      _
    // Predicated region
    $region18: #{encoder_layer_forward.6} parent=1 // pred_check
      _
    $region19: #{encoder_layer_forward.6} parent=1 // pred_check_branch
      %44 = sbr.rel (0) target = $region21
    $region20: #{encoder_layer_forward.6} parent=1 // pred_region
      _
    $region21: #{encoder_layer_forward.6} parent=1 // pred_fallthru
      _
    // Predicated region
    $region22: #{encoder_layer_forward.6} parent=1 // pred_check
      _
    $region23: #{encoder_layer_forward.6} parent=1 // pred_check_branch
      %46 = sbr.rel (0) target = $region25
    $region24: #{encoder_layer_forward.6} parent=1 // pred_region
      _
    $region25: #{encoder_layer_forward.6} parent=1 // pred_fallthru
      _
    // Predicated region
    $region26: #{encoder_layer_forward.6} parent=1 // pred_check
      _
    $region27: #{encoder_layer_forward.6} parent=1 // pred_check_branch
      %48 = sbr.rel (0) target = $region29
    $region28: #{encoder_layer_forward.6} parent=1 // pred_region
      %50 = dma.done [#allocation3], 256
    $region29: #{encoder_layer_forward.6} parent=1 // pred_fallthru
      _
    // Predicated region
    $region30: #{encoder_layer_forward.6} parent=1 // pred_check
      _
    $region31: #{encoder_layer_forward.6} parent=1 // pred_check_branch
      %52 = sbr.rel (0) target = $region33
    $region32: #{encoder_layer_forward.6} parent=1 // pred_region
      %54 = dma.done [#allocation5], 512
    $region33: #{encoder_layer_forward.6} parent=1 // pred_fallthru
      _
    %v55 = vld [vmem:[%s0] sm:$0xff]
    %v56 = vld [vmem:[%s0 + $0x8] sm:$0xff]
    %v57 = vld [vmem:[#allocation4] sm:$0xff]
    %v58 = vld [vmem:[#allocation4 + $0x8] sm:$0xff]
    %v59 = vld [vmem:[#allocation4 + $0x10] sm:$0xff]
    %v60 = vld [vmem:[#allocation4 + $0x18] sm:$0xff]
    %v61 = vld [vmem:[%s3] sm:$0x1]
    %v63 = vperm.slane %v61, 0
    %vm65 = vcmask 261120
    %v67 = vsel %vm65, %v55, 0
    %v70 = vsel %vm65, %v56, 0
    %72 = vmatpush.msra.mxu0 0.0
    %73 = vmatpush.msra.mxu0 0.0
    %74 = vmatpush.msra.mxu0 0.0
    %75 = vmatpush.msra.mxu0 0.0
    %76 = vmatpush.msra.mxu0 0.0
    %77 = vmatpush.msra.mxu0 0.0
    %78 = vmatpush.msra.mxu0 0.0
    %79 = vmatpush.msra.mxu0 0.0
    %80 = vmatpush.msra.mxu0 0.0
    %81 = vmatpush.msra.mxu0 0.0
    %82 = vmatpush.msra.mxu0 0.0
    %83 = vmatpush.msra.mxu0 0.0
    %84 = vmatpush.msra.mxu0 %v60
    %85 = vmatpush.msra.mxu0 %v59
    %86 = vmatpush.msra.mxu0 %v58
    %87 = vmatpush.msra.mxu0 %v57
    %88 = vmatmul.f32.gmra.mxu0 %v67
    %v89 = vpop.f32.mrf.mxu0
    %v90 = vadd.f32 %v63, %v89
    %91 = vmatmul.f32.gmra.mxu0 %v70
    %v92 = vpop.f32.mrf.mxu0
    %v93 = vadd.f32 %v63, %v92
    %94 = vdwg.mxu0
    %v95 = vld [vmem:[#allocation2] sm:$0xff]
    %v96 = vld [vmem:[#allocation2 + $0x8] sm:$0xff]
    %v97 = vadd.f32 %v95, %v90
    %v98 = vadd.f32 %v96, %v93
    %v99 = vsel %vm65, %v97, 0.0
    %100 = vadd.xlane.f32.xlu0 %v99
    %v101 = vpop.xlane.xlu0 %100
    %v102 = vsel %vm65, %v98, 0.0
    %103 = vadd.xlane.f32.xlu0 %v102
    %v104 = vpop.xlane.xlu0 %103
    %v105 = vrcp.pop 32.0
    %v106 = vmul.f32 32.0, %v105
    %v107 = vsub.f32 1.0, %v106
    %v108 = vmul.f32 %v105, %v107
    %v109 = vadd.f32 %v105, %v108
    %vm110 = vweird.f32 %v105
    %v111 = vsel %vm110, %v105, %v109
    %v112 = vmul.f32 %v101, %v111
    %v113 = vmul.f32 %v104, %v111
    %v114 = vsub.f32 %v97, %v112
    %v115 = vsub.f32 %v98, %v113
    %v116 = vmul.f32 %v114, %v114
    %v117 = vmul.f32 %v115, %v115
    %v118 = vsel %vm65, %v116, 0.0
    %119 = vadd.xlane.f32.xlu0 %v118
    %v120 = vpop.xlane.xlu0 %119
    %v121 = vsel %vm65, %v117, 0.0
    %122 = vadd.xlane.f32.xlu0 %v121
    %v123 = vpop.xlane.xlu0 %122
    %v124 = vmul.f32 %v120, %v111
    %v125 = vmul.f32 %v123, %v111
    %v126 = vadd.f32 %v124, 1e-05
    %v127 = vadd.f32 %v125, 1e-05
    %v128 = vrsqrt.pop %v126
    %v129 = vmul.f32 %v128, %v126
    %v130 = vmul.f32 %v129, %v128
    %v131 = vmul.f32 0.5, %v130
    %v132 = vsub.f32 1.5, %v131
    %v133 = vmul.f32 %v128, %v132
    %vm134 = vweird.f32 %v126
    %vm135 = vweird.f32 %v128
    %vm136 = vmor %vm134, %vm135
    %v137 = vsel %vm136, %v128, %v133
    %v138 = vrsqrt.pop %v127
    %v139 = vmul.f32 %v138, %v127
    %v140 = vmul.f32 %v139, %v138
    %v141 = vmul.f32 0.5, %v140
    %v142 = vsub.f32 1.5, %v141
    %v143 = vmul.f32 %v138, %v142
    %vm144 = vweird.f32 %v127
    %vm145 = vweird.f32 %v138
    %vm146 = vmor %vm144, %vm145
    %v147 = vsel %vm146, %v138, %v143
    %v148 = vmul.f32 %v114, %v137
    %v149 = vmul.f32 %v115, %v147
    %v150 = vld [vmem:[%s4] sm:$0x1]
    %v152 = vperm.slane %v150, 0
    %v154 = vmul.f32 %v148, %v152
    %v155 = vmul.f32 %v149, %v152
    %v156 = vld [vmem:[%s5] sm:$0x1]
    %v158 = vperm.slane %v156, 0
    %v160 = vadd.f32 %v154, %v158
    %v161 = vadd.f32 %v155, %v158
    %162 = vst.msk [vmem:[%s6] sm:$0xff] %vm65, %v160
    %163 = vst.msk [vmem:[%s6 + $0x8] sm:$0xff] %vm65, %v161
    // Predicated region
    $region34: #{encoder_layer_forward.6} parent=1 // pred_check
      _
    $region35: #{encoder_layer_forward.6} parent=1 // pred_check_branch
      %165 = sbr.rel (0) target = $region37
    $region36: #{encoder_layer_forward.6} parent=1 // pred_region
      _
    $region37: #{encoder_layer_forward.6} parent=1 // pred_fallthru
      _
    // Predicated region
    $region38: #{encoder_layer_forward.6} parent=1 // pred_check
      _
    $region39: #{encoder_layer_forward.6} parent=1 // pred_check_branch
      %167 = sbr.rel (0) target = $region41
    $region40: #{encoder_layer_forward.6} parent=1 // pred_region
      _
    $region41: #{encoder_layer_forward.6} parent=1 // pred_fallthru
      _
    %168 = vsyncpa [#allocation3], 1
    %169 = vsyncpa [#allocation5], 1

// kernel: encoder_layer_forward.5
$region0: #{encoder_layer_forward.5}
  #allocation0 [shape = 'u32[]', space=smem, size = 0x4, offset = 0x4, fixed_abs, tag = 'smem constant byte address 0x4 - core index']
  #allocation1 [shape = 'u32[72,128]{1,0:T(1,128)}', space=vmem, size = 0x9000, scoped, tag = 'internal scratch']
  %s0 = inlined_call_operand.vmem [shape: f32[2,8,32], index: 0, kind: input, shape index: {}]
  %s1 = inlined_call_operand.vmem [shape: f32[2,8,32], index: 1, kind: input, shape index: {}]
  %s2 = inlined_call_operand.vmem [shape: f32[2,8,32], index: 2, kind: input, shape index: {}]
  %s3 = inlined_call_operand.vmem [shape: f32[2,8,32], index: 3, kind: output, shape index: {}]
  %s4 = sld [smem:[#allocation0]]
  $region45: #{encoder_layer_forward.5} parent=0
    _
  %s6 = ssub.s32 1, %s4
  %s7 = scalar_select 0, %s6, %s4
  loop: start=0, step=1, limit=4
  $region2: #{encoder_layer_forward.5} parent=0 // loop_pre_header
    _
  $region3: #{encoder_layer_forward.5} parent=0 // loop_header
    %s9 = sphi 0, %s13
    %p10 = scmp.ge.s32.totalorder %s9, 4
    %s16 = sphi 0, %s28
    %s17 = sphi 0, %s24
    %s18 = sphi 0, %s16
    %s19 = sphi 0, %s17
    %s20 = sphi 0, %s18
    %s21 = sphi 0, %s19
    %s33 = sphi 0, %s35
    %s36 = sphi 0, %s33
    %s37 = sphi 0, %s36
    %s53 = sphi 0, %s37
    %s59 = sphi 0, %s61
    %s62 = sphi 0, %s59
    %s63 = sphi 0, %s62
    %s79 = sphi 0, %s63
    %s85 = sphi 0, %s87
    %s88 = sphi 0, %s85
    %s89 = sphi 0, %s88
    %s105 = sphi 0, %s89
    %s113 = sphi 0, %s115
    %s116 = sphi 0, %s113
    %s117 = sphi 0, %s116
    %s133 = sphi 0, %s117
  $region4: #{encoder_layer_forward.5} parent=0 // loop_header_branch
    %12 = sbr.rel (%p10) target = $region8
  $region5: #{encoder_layer_forward.5} parent=0 // loop_body
    %s14 = ssub.s32 %s9, 1
    %s15 = ssub.s32 %s9, 2
    %s22 = sadd.s32 1, %s17
    %p23 = scmp.ge.s32.totalorder %s22, 1
    %s24 = scalar_select %p23, 0, %s22
    %s25 = sadd.s32 1, %s16
    %s26 = scalar_select %p23, %s25, %s16
    %p27 = scmp.ge.s32.totalorder %s26, 2
    %s28 = scalar_select %p27, 0, %s26
    %s29 = ssub.s32 %s16, %s28
    %s30 = ssub.s32 %s17, %s24
    %s31 = sor.u32 %s29, %s30
    %p32 = scmp.eq.s32.totalorder %s31, 0
    %s34 = sadd.s32 %s33, 1
    %s35 = scalar_select %p32, %s33, %s34
    %p38 = pneg %p32
    %p39 = scmp.eq.s32.totalorder %s9, 1
    %p40 = por %p38, %p39
    %p41 = scmp.ne.s32.totalorder %s33, %s36
    %p42 = scmp.eq.s32.totalorder %s9, 0
    %p43 = por %p41, %p42
    %p44 = scmp.ne.s32.totalorder %s33, %s36
    %p45 = scmp.eq.s32.totalorder %s14, 1
    %p46 = por %p44, %p45
    %p47 = scmp.ne.s32.totalorder %s36, %s37
    %p48 = scmp.eq.s32.totalorder %s14, 0
    %p49 = por %p47, %p48
    %p50 = scmp.ne.s32.totalorder %s36, %s37
    %p51 = scmp.eq.s32.totalorder %s15, 1
    %p52 = por %p50, %p51
    %p54 = scmp.ne.s32.totalorder %s37, %s53
    %p55 = scmp.eq.s32.totalorder %s15, 0
    %p56 = por %p54, %p55
    %s57 = ssub.s32 %s16, %s28
    %p58 = scmp.eq.s32.totalorder %s57, 0
    %s60 = sadd.s32 %s59, 1
    %s61 = scalar_select %p58, %s59, %s60
    %p64 = pneg %p58
    %p65 = scmp.eq.s32.totalorder %s9, 1
    %p66 = por %p64, %p65
    %p67 = scmp.ne.s32.totalorder %s59, %s62
    %p68 = scmp.eq.s32.totalorder %s9, 0
    %p69 = por %p67, %p68
    %p70 = scmp.ne.s32.totalorder %s59, %s62
    %p71 = scmp.eq.s32.totalorder %s14, 1
    %p72 = por %p70, %p71
    %p73 = scmp.ne.s32.totalorder %s62, %s63
    %p74 = scmp.eq.s32.totalorder %s14, 0
    %p75 = por %p73, %p74
    %p76 = scmp.ne.s32.totalorder %s62, %s63
    %p77 = scmp.eq.s32.totalorder %s15, 1
    %p78 = por %p76, %p77
    %p80 = scmp.ne.s32.totalorder %s63, %s79
    %p81 = scmp.eq.s32.totalorder %s15, 0
    %p82 = por %p80, %p81
    %s83 = ssub.s32 %s16, %s28
    %p84 = scmp.eq.s32.totalorder %s83, 0
    %s86 = sadd.s32 %s85, 1
    %s87 = scalar_select %p84, %s85, %s86
    %p90 = pneg %p84
    %p91 = scmp.eq.s32.totalorder %s9, 1
    %p92 = por %p90, %p91
    %p93 = scmp.ne.s32.totalorder %s85, %s88
    %p94 = scmp.eq.s32.totalorder %s9, 0
    %p95 = por %p93, %p94
    %p96 = scmp.ne.s32.totalorder %s85, %s88
    %p97 = scmp.eq.s32.totalorder %s14, 1
    %p98 = por %p96, %p97
    %p99 = scmp.ne.s32.totalorder %s88, %s89
    %p100 = scmp.eq.s32.totalorder %s14, 0
    %p101 = por %p99, %p100
    %p102 = scmp.ne.s32.totalorder %s88, %s89
    %p103 = scmp.eq.s32.totalorder %s15, 1
    %p104 = por %p102, %p103
    %p106 = scmp.ne.s32.totalorder %s89, %s105
    %p107 = scmp.eq.s32.totalorder %s15, 0
    %p108 = por %p106, %p107
    %s109 = ssub.s32 %s16, %s28
    %s110 = ssub.s32 %s17, %s24
    %s111 = sor.u32 %s109, %s110
    %p112 = scmp.eq.s32.totalorder %s111, 0
    %s114 = sadd.s32 %s113, 1
    %s115 = scalar_select %p112, %s113, %s114
    %p118 = pneg %p112
    %p119 = scmp.eq.s32.totalorder %s9, 1
    %p120 = por %p118, %p119
    %p121 = scmp.ne.s32.totalorder %s113, %s116
    %p122 = scmp.eq.s32.totalorder %s9, 0
    %p123 = por %p121, %p122
    %p124 = scmp.ne.s32.totalorder %s113, %s116
    %p125 = scmp.eq.s32.totalorder %s14, 1
    %p126 = por %p124, %p125
    %p127 = scmp.ne.s32.totalorder %s116, %s117
    %p128 = scmp.eq.s32.totalorder %s14, 0
    %p129 = por %p127, %p128
    %p130 = scmp.ne.s32.totalorder %s116, %s117
    %p131 = scmp.eq.s32.totalorder %s15, 1
    %p132 = por %p130, %p131
    %p134 = scmp.ne.s32.totalorder %s117, %s133
    %p135 = scmp.eq.s32.totalorder %s15, 0
    %p136 = por %p134, %p135
    %p137 = scmp.le.s32.totalorder 1, %s9
    %p138 = scmp.lt.s32.totalorder %s9, 3
    %p139 = pnand %p137, %p138
    %p140 = pneg %p139
    // Predicated region
    $region9: #{encoder_layer_forward.5} parent=5 // pred_check
      _
    $region10: #{encoder_layer_forward.5} parent=5 // pred_check_branch
      %142 = sbr.rel (%p139) target = $region12
    $region11: #{encoder_layer_forward.5} parent=5 // pred_region
      %s143 = ssub.s32 %s9, 1
    $region12: #{encoder_layer_forward.5} parent=5 // pred_fallthru
      _
    %p144 = scmp.lt.s32.totalorder %s9, 2
    // Predicated region
    $region13: #{encoder_layer_forward.5} parent=5 // pred_check
      %p145 = pneg %p144
    $region14: #{encoder_layer_forward.5} parent=5 // pred_check_branch
      %147 = sbr.rel (%p145) target = $region16
    $region15: #{encoder_layer_forward.5} parent=5 // pred_region
      // Predicated region
      $region17: #{encoder_layer_forward.5} parent=15 // pred_check
        %p148 = pneg %p43
      $region18: #{encoder_layer_forward.5} parent=15 // pred_check_branch
        %150 = sbr.rel (%p148) target = $region20
      $region19: #{encoder_layer_forward.5} parent=15 // pred_region
        %p151 = scmp.lt.s32.totalorder %s16, 1
        %s152 = scalar_select %p151, %s16, 1
        %p153 = scmp.lt.s32.totalorder %s17, 0
        %s154 = scalar_select %p153, %s17, 0
        %s155 = sadd.s32 %s154, %s152
        %s156 = smul.addr %s155, 8
        %s157 = scalar_lea.vmem %s0, %s156
      $region20: #{encoder_layer_forward.5} parent=15 // pred_fallthru
        _
      // Predicated region
      $region21: #{encoder_layer_forward.5} parent=15 // pred_check
        %p158 = pneg %p69
      $region22: #{encoder_layer_forward.5} parent=15 // pred_check_branch
        %160 = sbr.rel (%p158) target = $region24
      $region23: #{encoder_layer_forward.5} parent=15 // pred_region
        %p161 = scmp.lt.s32.totalorder %s16, 1
        %s162 = scalar_select %p161, %s16, 1
        %s163 = smul.addr %s162, 8
        %s164 = scalar_lea.vmem %s1, %s163
      $region24: #{encoder_layer_forward.5} parent=15 // pred_fallthru
        _
      // Predicated region
      $region25: #{encoder_layer_forward.5} parent=15 // pred_check
        %p165 = pneg %p95
      $region26: #{encoder_layer_forward.5} parent=15 // pred_check_branch
        %167 = sbr.rel (%p165) target = $region28
      $region27: #{encoder_layer_forward.5} parent=15 // pred_region
        %p168 = scmp.lt.s32.totalorder %s16, 1
        %s169 = scalar_select %p168, %s16, 1
        %s170 = smul.addr %s169, 8
        %s171 = scalar_lea.vmem %s2, %s170
      $region28: #{encoder_layer_forward.5} parent=15 // pred_fallthru
        _
    $region16: #{encoder_layer_forward.5} parent=5 // pred_fallthru
      _
    %p172 = scmp.le.s32.totalorder 1, %s9
    %p173 = scmp.lt.s32.totalorder %s9, 3
    %p174 = pnand %p172, %p173
    %p175 = pneg %p174
    // Predicated region
    $region29: #{encoder_layer_forward.5} parent=5 // pred_check
      _
    $region30: #{encoder_layer_forward.5} parent=5 // pred_check_branch
      %177 = sbr.rel (%p174) target = $region32
    $region31: #{encoder_layer_forward.5} parent=5 // pred_region
      %s178 = ssub.s32 %s9, 1
      %p179 = scmp.lt.s32.totalorder %s18, 1
      %s180 = scalar_select %p179, %s18, 1
      %p181 = scmp.lt.s32.totalorder %s19, 0
      %s182 = scalar_select %p181, %s19, 0
      %s183 = sadd.s32 %s182, %s180
      %s184 = smul.addr %s183, 8
      %s185 = scalar_lea.vmem %s0, %s184
      %p186 = pneg %p49
      %p187 = pneg %p46
      %p188 = scmp.lt.s32.totalorder %s18, 1
      %s189 = scalar_select %p188, %s18, 1
      %s190 = smul.addr %s189, 8
      %s191 = scalar_lea.vmem %s1, %s190
      %p192 = pneg %p75
      %p193 = pneg %p72
      %p194 = scmp.lt.s32.totalorder %s18, 1
      %s195 = scalar_select %p194, %s18, 1
      %s196 = smul.addr %s195, 8
      %s197 = scalar_lea.vmem %s2, %s196
      %p198 = pneg %p101
      %p199 = pneg %p98
      %p200 = pneg %p129
      %p201 = pneg %p126
      %p202 = scmp.lt.s32.totalorder %s18, 1
      %s203 = scalar_select %p202, %s18, 1
      %p204 = scmp.lt.s32.totalorder %s19, 0
      %s205 = scalar_select %p204, %s19, 0
      %s206 = sadd.s32 %s205, %s203
      %s207 = smul.addr %s206, 8
      %s208 = scalar_lea.vmem %s3, %s207
      %p209 = scmp.lt.s32.totalorder %s18, 1
      %s210 = scalar_select %p209, %s18, 1
      %p211 = scmp.lt.s32.totalorder %s19, 0
      %s212 = scalar_select %p211, %s19, 0
      %s213 = sadd.s32 %s212, %s210
      %s214 = smul.addr %s213, 8
      %s215 = scalar_lea.vmem %s0, %s214
      %p216 = scmp.lt.s32.totalorder %s18, 1
      %s217 = scalar_select %p216, %s18, 1
      %s218 = smul.addr %s217, 8
      %s219 = scalar_lea.vmem %s1, %s218
      %p220 = scmp.lt.s32.totalorder %s18, 1
      %s221 = scalar_select %p220, %s18, 1
      %s222 = smul.addr %s221, 8
      %s223 = scalar_lea.vmem %s2, %s222
      %p224 = scmp.lt.s32.totalorder %s18, 1
      %s225 = scalar_select %p224, %s18, 1
      %p226 = scmp.lt.s32.totalorder %s19, 0
      %s227 = scalar_select %p226, %s19, 0
      %s228 = sadd.s32 %s227, %s225
      %s229 = smul.addr %s228, 8
      %s230 = scalar_lea.vmem %s3, %s229
      %v231 = vld [vmem:[%s215] sm:$0xff]
      %v232 = vld [vmem:[%s219] sm:$0xff]
      %v233 = vld [vmem:[%s223] sm:$0xff]
      %v234 = vmul.f32 %v231, 0.35355338
      %vm235 = vcmask 64512
      %v237 = vsel %vm235, %v234, 0
      %v240 = vsel %vm235, %v232, 0
      %242 = vmatpush.xpose.msra.mxu0 0.0
      %243 = vmatpush.xpose.msra.mxu0 0.0
      %244 = vmatpush.xpose.msra.mxu0 0.0
      %245 = vmatpush.xpose.msra.mxu0 0.0
      %246 = vmatpush.xpose.msra.mxu0 0.0
      %247 = vmatpush.xpose.msra.mxu0 0.0
      %248 = vmatpush.xpose.msra.mxu0 0.0
      %249 = vmatpush.xpose.msra.mxu0 0.0
      %250 = vmatpush.xpose.msra.mxu0 0.0
      %251 = vmatpush.xpose.msra.mxu0 0.0
      %252 = vmatpush.xpose.msra.mxu0 0.0
      %253 = vmatpush.xpose.msra.mxu0 0.0
      %254 = vmatpush.xpose.msra.mxu0 0.0
      %255 = vmatpush.xpose.msra.mxu0 0.0
      %256 = vmatpush.xpose.msra.mxu0 0.0
      %257 = vmatpush.xpose.msra.mxu0 %v240
      %258 = vmatmul.f32.gmra.mxu0 %v237
      %v259 = vpop.f32.mrf.mxu0
      %v260 = vadd.f32 0.0, %v259
      %261 = vdwg.mxu0
      %v262 = vsel %vm235, %v260, -inf
      %263 = vmax.xlane.f32.xlu0 %v262
      %v264 = vpop.xlane.xlu0 %263
      %v265 = vsub.f32 %v260, %v264
      %v266 = vmul.f32 %v265, 1.442695
      %v267 = vpow.pop %v266
      %v268 = vsel %vm235, %v267, 0.0
      %269 = vadd.xlane.f32.xlu0 %v268
      %v270 = vpop.xlane.xlu0 %269
      %v271 = vrcp.pop %v270
      %v272 = vmul.f32 %v270, %v271
      %v273 = vsub.f32 1.0, %v272
      %v274 = vmul.f32 %v271, %v273
      %v275 = vadd.f32 %v271, %v274
      %vm276 = vweird.f32 %v270
      %vm277 = vweird.f32 %v271
      %vm278 = vmor %vm276, %vm277
      %v279 = vsel %vm278, %v271, %v275
      %v280 = vand.u32 2147483647, %v270
      %vm281 = vcmp.eq.f32.partialorder %v280, 8.507059e+37
      %v282 = vand.u32 %v270, 2147483648
      %v283 = vor.u32 1.1754944e-38, %v282
      %v284 = vsel %vm281, %v283, %v279
      %v285 = vmul.f32 %v267, %v284
      %v287 = vsel %vm235, %v285, 0
      %289 = vmatpush.msra.mxu0 0.0
      %290 = vmatpush.msra.mxu0 0.0
      %291 = vmatpush.msra.mxu0 0.0
      %292 = vmatpush.msra.mxu0 0.0
      %293 = vmatpush.msra.mxu0 0.0
      %294 = vmatpush.msra.mxu0 0.0
      %295 = vmatpush.msra.mxu0 0.0
      %296 = vmatpush.msra.mxu0 0.0
      %297 = vmatpush.msra.mxu0 0.0
      %298 = vmatpush.msra.mxu0 0.0
      %299 = vmatpush.msra.mxu0 0.0
      %300 = vmatpush.msra.mxu0 0.0
      %301 = vmatpush.msra.mxu0 0.0
      %302 = vmatpush.msra.mxu0 0.0
      %303 = vmatpush.msra.mxu0 0.0
      %304 = vmatpush.msra.mxu0 %v233
      %305 = vmatmul.f32.gmra.mxu0 %v287
      %v306 = vpop.f32.mrf.mxu0
      %v307 = vadd.f32 0.0, %v306
      %308 = vdwg.mxu0
      %309 = vst.msk [vmem:[%s230] sm:$0xff] %vm235, %v307
      %310 = vrot.lane.b32.xlu0 %v234, 120
      %v311 = vpop.permute.xlu0 %310
      %312 = vrot.lane.b32.xlu0 %v232, 120
      %v313 = vpop.permute.xlu0 %312
      %v314 = vsel %vm235, %v311, 0
      %v316 = vsel %vm235, %v313, 0
      %318 = vmatpush.xpose.msra.mxu0 0.0
      %319 = vmatpush.xpose.msra.mxu0 0.0
      %320 = vmatpush.xpose.msra.mxu0 0.0
      %321 = vmatpush.xpose.msra.mxu0 0.0
      %322 = vmatpush.xpose.msra.mxu0 0.0
      %323 = vmatpush.xpose.msra.mxu0 0.0
      %324 = vmatpush.xpose.msra.mxu0 0.0
      %325 = vmatpush.xpose.msra.mxu0 0.0
      %326 = vmatpush.xpose.msra.mxu0 0.0
      %327 = vmatpush.xpose.msra.mxu0 0.0
      %328 = vmatpush.xpose.msra.mxu0 0.0
      %329 = vmatpush.xpose.msra.mxu0 0.0
      %330 = vmatpush.xpose.msra.mxu0 0.0
      %331 = vmatpush.xpose.msra.mxu0 0.0
      %332 = vmatpush.xpose.msra.mxu0 0.0
      %333 = vmatpush.xpose.msra.mxu0 %v316
      %334 = vmatmul.f32.gmra.mxu0 %v314
      %v335 = vpop.f32.mrf.mxu0
      %v336 = vadd.f32 0.0, %v335
      %337 = vdwg.mxu0
      %v338 = vsel %vm235, %v336, -inf
      %339 = vmax.xlane.f32.xlu0 %v338
      %v340 = vpop.xlane.xlu0 %339
      %v341 = vsub.f32 %v336, %v340
      %v342 = vmul.f32 %v341, 1.442695
      %v343 = vpow.pop %v342
      %v344 = vsel %vm235, %v343, 0.0
      %345 = vadd.xlane.f32.xlu0 %v344
      %v346 = vpop.xlane.xlu0 %345
      %v347 = vrcp.pop %v346
      %v348 = vmul.f32 %v346, %v347
      %v349 = vsub.f32 1.0, %v348
      %v350 = vmul.f32 %v347, %v349
      %v351 = vadd.f32 %v347, %v350
      %vm352 = vweird.f32 %v346
      %vm353 = vweird.f32 %v347
      %vm354 = vmor %vm352, %vm353
      %v355 = vsel %vm354, %v347, %v351
      %v356 = vand.u32 2147483647, %v346
      %vm357 = vcmp.eq.f32.partialorder %v356, 8.507059e+37
      %v358 = vand.u32 %v346, 2147483648
      %v359 = vor.u32 1.1754944e-38, %v358
      %v360 = vsel %vm357, %v359, %v355
      %v361 = vmul.f32 %v343, %v360
      %363 = vrot.lane.b32.xlu0 %v233, 120
      %v364 = vpop.permute.xlu0 %363
      %v367 = vsel %vm235, %v361, 0
      %369 = vmatpush.msra.mxu0 0.0
      %370 = vmatpush.msra.mxu0 0.0
      %371 = vmatpush.msra.mxu0 0.0
      %372 = vmatpush.msra.mxu0 0.0
      %373 = vmatpush.msra.mxu0 0.0
      %374 = vmatpush.msra.mxu0 0.0
      %375 = vmatpush.msra.mxu0 0.0
      %376 = vmatpush.msra.mxu0 0.0
      %377 = vmatpush.msra.mxu0 0.0
      %378 = vmatpush.msra.mxu0 0.0
      %379 = vmatpush.msra.mxu0 0.0
      %380 = vmatpush.msra.mxu0 0.0
      %381 = vmatpush.msra.mxu0 0.0
      %382 = vmatpush.msra.mxu0 0.0
      %383 = vmatpush.msra.mxu0 0.0
      %384 = vmatpush.msra.mxu0 %v364
      %385 = vmatmul.f32.gmra.mxu0 %v367
      %v386 = vpop.f32.mrf.mxu0
      %v387 = vadd.f32 0.0, %v386
      %388 = vdwg.mxu0
      %390 = vrot.lane.b32.xlu0 %v387, 8
      %v391 = vpop.permute.xlu0 %390
      %vm393 = vcmask 130112
      %394 = vst.msk [vmem:[%s230] sm:$0xff] %vm393, %v391
      %395 = vrot.lane.b32.xlu0 %v234, 112
      %v396 = vpop.permute.xlu0 %395
      %397 = vrot.lane.b32.xlu0 %v232, 112
      %v398 = vpop.permute.xlu0 %397
      %v399 = vsel %vm235, %v396, 0
      %v401 = vsel %vm235, %v398, 0
      %403 = vmatpush.xpose.msra.mxu0 0.0
      %404 = vmatpush.xpose.msra.mxu0 0.0
      %405 = vmatpush.xpose.msra.mxu0 0.0
      %406 = vmatpush.xpose.msra.mxu0 0.0
      %407 = vmatpush.xpose.msra.mxu0 0.0
      %408 = vmatpush.xpose.msra.mxu0 0.0
      %409 = vmatpush.xpose.msra.mxu0 0.0
      %410 = vmatpush.xpose.msra.mxu0 0.0
      %411 = vmatpush.xpose.msra.mxu0 0.0
      %412 = vmatpush.xpose.msra.mxu0 0.0
      %413 = vmatpush.xpose.msra.mxu0 0.0
      %414 = vmatpush.xpose.msra.mxu0 0.0
      %415 = vmatpush.xpose.msra.mxu0 0.0
      %416 = vmatpush.xpose.msra.mxu0 0.0
      %417 = vmatpush.xpose.msra.mxu0 0.0
      %418 = vmatpush.xpose.msra.mxu0 %v401
      %419 = vmatmul.f32.gmra.mxu0 %v399
      %v420 = vpop.f32.mrf.mxu0
      %v421 = vadd.f32 0.0, %v420
      %422 = vdwg.mxu0
      %v423 = vsel %vm235, %v421, -inf
      %424 = vmax.xlane.f32.xlu0 %v423
      %v425 = vpop.xlane.xlu0 %424
      %v426 = vsub.f32 %v421, %v425
      %v427 = vmul.f32 %v426, 1.442695
      %v428 = vpow.pop %v427
      %v429 = vsel %vm235, %v428, 0.0
      %430 = vadd.xlane.f32.xlu0 %v429
      %v431 = vpop.xlane.xlu0 %430
      %v432 = vrcp.pop %v431
      %v433 = vmul.f32 %v431, %v432
      %v434 = vsub.f32 1.0, %v433
      %v435 = vmul.f32 %v432, %v434
      %v436 = vadd.f32 %v432, %v435
      %vm437 = vweird.f32 %v431
      %vm438 = vweird.f32 %v432
      %vm439 = vmor %vm437, %vm438
      %v440 = vsel %vm439, %v432, %v436
      %v441 = vand.u32 2147483647, %v431
      %vm442 = vcmp.eq.f32.partialorder %v441, 8.507059e+37
      %v443 = vand.u32 %v431, 2147483648
      %v444 = vor.u32 1.1754944e-38, %v443
      %v445 = vsel %vm442, %v444, %v440
      %v446 = vmul.f32 %v428, %v445
      %447 = vrot.lane.b32.xlu0 %v233, 112
      %v448 = vpop.permute.xlu0 %447
      %v451 = vsel %vm235, %v446, 0
      %453 = vmatpush.msra.mxu0 0.0
      %454 = vmatpush.msra.mxu0 0.0
      %455 = vmatpush.msra.mxu0 0.0
      %456 = vmatpush.msra.mxu0 0.0
      %457 = vmatpush.msra.mxu0 0.0
      %458 = vmatpush.msra.mxu0 0.0
      %459 = vmatpush.msra.mxu0 0.0
      %460 = vmatpush.msra.mxu0 0.0
      %461 = vmatpush.msra.mxu0 0.0
      %462 = vmatpush.msra.mxu0 0.0
      %463 = vmatpush.msra.mxu0 0.0
      %464 = vmatpush.msra.mxu0 0.0
      %465 = vmatpush.msra.mxu0 0.0
      %466 = vmatpush.msra.mxu0 0.0
      %467 = vmatpush.msra.mxu0 0.0
      %468 = vmatpush.msra.mxu0 %v448
      %469 = vmatmul.f32.gmra.mxu0 %v451
      %v470 = vpop.f32.mrf.mxu0
      %v471 = vadd.f32 0.0, %v470
      %472 = vdwg.mxu0
      %474 = vrot.lane.b32.xlu0 %v471, 16
      %v475 = vpop.permute.xlu0 %474
      %vm477 = vcmask 195712
      %478 = vst.msk [vmem:[%s230] sm:$0xff] %vm477, %v475
      %479 = vrot.lane.b32.xlu0 %v234, 104
      %v480 = vpop.permute.xlu0 %479
      %481 = vrot.lane.b32.xlu0 %v232, 104
      %v482 = vpop.permute.xlu0 %481
      %v483 = vsel %vm235, %v480, 0
      %v485 = vsel %vm235, %v482, 0
      %487 = vmatpush.xpose.msra.mxu0 0.0
      %488 = vmatpush.xpose.msra.mxu0 0.0
      %489 = vmatpush.xpose.msra.mxu0 0.0
      %490 = vmatpush.xpose.msra.mxu0 0.0
      %491 = vmatpush.xpose.msra.mxu0 0.0
      %492 = vmatpush.xpose.msra.mxu0 0.0
      %493 = vmatpush.xpose.msra.mxu0 0.0
      %494 = vmatpush.xpose.msra.mxu0 0.0
      %495 = vmatpush.xpose.msra.mxu0 0.0
      %496 = vmatpush.xpose.msra.mxu0 0.0
      %497 = vmatpush.xpose.msra.mxu0 0.0
      %498 = vmatpush.xpose.msra.mxu0 0.0
      %499 = vmatpush.xpose.msra.mxu0 0.0
      %500 = vmatpush.xpose.msra.mxu0 0.0
      %501 = vmatpush.xpose.msra.mxu0 0.0
      %502 = vmatpush.xpose.msra.mxu0 %v485
      %503 = vmatmul.f32.gmra.mxu0 %v483
      %v504 = vpop.f32.mrf.mxu0
      %v505 = vadd.f32 0.0, %v504
      %506 = vdwg.mxu0
      %v507 = vsel %vm235, %v505, -inf
      %508 = vmax.xlane.f32.xlu0 %v507
      %v509 = vpop.xlane.xlu0 %508
      %v510 = vsub.f32 %v505, %v509
      %v511 = vmul.f32 %v510, 1.442695
      %v512 = vpow.pop %v511
      %v513 = vsel %vm235, %v512, 0.0
      %514 = vadd.xlane.f32.xlu0 %v513
      %v515 = vpop.xlane.xlu0 %514
      %v516 = vrcp.pop %v515
      %v517 = vmul.f32 %v515, %v516
      %v518 = vsub.f32 1.0, %v517
      %v519 = vmul.f32 %v516, %v518
      %v520 = vadd.f32 %v516, %v519
      %vm521 = vweird.f32 %v515
      %vm522 = vweird.f32 %v516
      %vm523 = vmor %vm521, %vm522
      %v524 = vsel %vm523, %v516, %v520
      %v525 = vand.u32 2147483647, %v515
      %vm526 = vcmp.eq.f32.partialorder %v525, 8.507059e+37
      %v527 = vand.u32 %v515, 2147483648
      %v528 = vor.u32 1.1754944e-38, %v527
      %v529 = vsel %vm526, %v528, %v524
      %v530 = vmul.f32 %v512, %v529
      %531 = vrot.lane.b32.xlu0 %v233, 104
      %v532 = vpop.permute.xlu0 %531
      %v535 = vsel %vm235, %v530, 0
      %537 = vmatpush.msra.mxu0 0.0
      %538 = vmatpush.msra.mxu0 0.0
      %539 = vmatpush.msra.mxu0 0.0
      %540 = vmatpush.msra.mxu0 0.0
      %541 = vmatpush.msra.mxu0 0.0
      %542 = vmatpush.msra.mxu0 0.0
      %543 = vmatpush.msra.mxu0 0.0
      %544 = vmatpush.msra.mxu0 0.0
      %545 = vmatpush.msra.mxu0 0.0
      %546 = vmatpush.msra.mxu0 0.0
      %547 = vmatpush.msra.mxu0 0.0
      %548 = vmatpush.msra.mxu0 0.0
      %549 = vmatpush.msra.mxu0 0.0
      %550 = vmatpush.msra.mxu0 0.0
      %551 = vmatpush.msra.mxu0 0.0
      %552 = vmatpush.msra.mxu0 %v532
      %553 = vmatmul.f32.gmra.mxu0 %v535
      %v554 = vpop.f32.mrf.mxu0
      %v555 = vadd.f32 0.0, %v554
      %556 = vdwg.mxu0
      %558 = vrot.lane.b32.xlu0 %v555, 24
      %v559 = vpop.permute.xlu0 %558
      %vm561 = vcmask 261312
      %562 = vst.msk [vmem:[%s230] sm:$0xff] %vm561, %v559
      %p563 = scmp.lt.s32.totalorder %s18, 1
      %s564 = scalar_select %p563, %s18, 1
      %p565 = scmp.lt.s32.totalorder %s19, 0
      %s566 = scalar_select %p565, %s19, 0
      %s567 = sadd.s32 %s566, %s564
      %s568 = smul.addr %s567, 8
      %s569 = scalar_lea.vmem %s3, %s568
      // Predicated region
      $region33: #{encoder_layer_forward.5} parent=31 // pred_check
        %p570 = pneg %p126
      $region34: #{encoder_layer_forward.5} parent=31 // pred_check_branch
        %572 = sbr.rel (%p570) target = $region36
      $region35: #{encoder_layer_forward.5} parent=31 // pred_region
        _
      $region36: #{encoder_layer_forward.5} parent=31 // pred_fallthru
        _
    $region32: #{encoder_layer_forward.5} parent=5 // pred_fallthru
      _
    %p573 = scmp.le.s32.totalorder 2, %s9
    // Predicated region
    $region37: #{encoder_layer_forward.5} parent=5 // pred_check
      %p574 = pneg %p573
    $region38: #{encoder_layer_forward.5} parent=5 // pred_check_branch
      %576 = sbr.rel (%p574) target = $region40
    $region39: #{encoder_layer_forward.5} parent=5 // pred_region
      %s577 = ssub.s32 %s9, 2
      // Predicated region
      $region41: #{encoder_layer_forward.5} parent=39 // pred_check
        %p578 = pneg %p132
      $region42: #{encoder_layer_forward.5} parent=39 // pred_check_branch
        %580 = sbr.rel (%p578) target = $region44
      $region43: #{encoder_layer_forward.5} parent=39 // pred_region
        %p581 = scmp.lt.s32.totalorder %s20, 1
        %s582 = scalar_select %p581, %s20, 1
        %p583 = scmp.lt.s32.totalorder %s21, 0
        %s584 = scalar_select %p583, %s21, 0
        %s585 = sadd.s32 %s584, %s582
        %s586 = smul.addr %s585, 8
        %s587 = scalar_lea.vmem %s3, %s586
      $region44: #{encoder_layer_forward.5} parent=39 // pred_fallthru
        _
    $region40: #{encoder_layer_forward.5} parent=5 // pred_fallthru
      _
  $region6: #{encoder_layer_forward.5} parent=0 // loop_footer
    %s13 = sadd.s32 1, %s9
  $region7: #{encoder_layer_forward.5} parent=0 // loop_footer_branch
    %8 = sbr.rel target = $region3
  $region8: #{encoder_layer_forward.5} parent=0 // loop_exit
    _

</llo_original>
